<compile_context>
chip_gen: v7x
topology: tpu7x:2x2x1
jax: 0.10.0
libtpu: 0.0.40
codegen_flags: <defaults>
</compile_context>

<pallas_src>
import functools

import jax
import jax.numpy as jnp
import numpy as np
from jax.experimental import pallas as pl
from jax.experimental.pallas import tpu as pltpu


def _depthconv_kernel(w_ref, b_ref, x_ref, *rest, H, W, K, pad, keep_thresh, training):
    # w_ref : VMEM (K*K, Cblk) f32   per-tap, per-channel weights (pre-scaled if training)
    # b_ref : VMEM (1, Cblk)   f32   bias (pre-scaled if training)
    # x_ref : VMEM (1, H, W, Cblk) f32   unpadded input block (channels-last)
    # [rnd_ref : VMEM (1, H, W, Cblk) int32   uniform bits in [0, 2^24), training only]
    # o_ref : VMEM (1, H, W, Cblk) f32
    # xpad_ref : VMEM scratch (H+2p, W+2p, Cblk) f32
    if training:
        rnd_ref, o_ref, xpad_ref = rest
    else:
        o_ref, xpad_ref = rest

    cblk = o_ref.shape[-1]

    # Build the zero-padded ('same') slab in VMEM; no HBM round trip for padding.
    xpad_ref[...] = jnp.zeros_like(xpad_ref)
    xpad_ref[pl.ds(pad, H), pl.ds(pad, W), :] = x_ref[0]

    # Accumulator starts from the broadcast (pre-scaled) bias.
    acc = jnp.broadcast_to(b_ref[0][None, None, :], (H, W, cblk)).astype(jnp.float32)

    # Unrolled K*K shifted multiply-adds.  Taps are (Cblk,) lane vectors, so each
    # MAC is a full-vreg VPU op; shifts are along outer (H) and sublane (W) axes.
    for kh in range(K):
        for kw in range(K):
            tap = w_ref[kh * K + kw]                                # (Cblk,)
            win = xpad_ref[pl.ds(kh, H), pl.ds(kw, W), :]           # (H, W, Cblk)
            acc = acc + win * tap[None, None, :]

    if training:
        # Integer threshold dropout; 1/(1-p) rescale already folded into w/b.
        keep = rnd_ref[0] >= jnp.int32(keep_thresh)
        acc = jnp.where(keep, acc, 0.0)

    o_ref[0] = acc.astype(o_ref.dtype)


def _pick_c_block(C, H, W, pad, training):
    """Largest lane-dense channel block that fits a modest double-buffered VMEM budget."""
    if C % 128 != 0:
        # Small / ragged channel count: use the full channel dim (legal block:
        # last dim equal to the full array dim).
        return C
    n_bufs = 3 if training else 2            # x (+ rnd) + out, each double-buffered
    per_c = 4 * (2 * n_bufs * H * W + (H + 2 * pad) * (W + 2 * pad))
    budget = 16 * 1024 * 1024
    blk = max(128, min(C, (budget // max(per_c, 1)) // 128 * 128))
    while C % blk != 0:
        blk -= 128
    return blk


def depthconv2d(x, weight, bias, *, p=0.3, training=False, key=None):
    """x: (N, C, H, W); weight: (C, 1, K, K); bias: (C,). Returns (N, C, H, W) f32."""
    N, C, H, W = x.shape
    K = int(weight.shape[-1])
    assert weight.shape == (C, 1, K, K)
    assert K % 2 == 1, "padding='same' implemented for odd kernel sizes"
    pad = (K - 1) // 2
    Hp, Wp = H + 2 * pad, W + 2 * pad

    apply_drop = bool(training) and float(p) > 0.0
    if bool(training) and float(p) >= 1.0:
        # Dropout with p >= 1 zeroes everything; avoid 1/(1-p) blow-up.
        return jnp.zeros((N, C, H, W), jnp.float32)

    # Channels-last (lane-dense) layout plumbing.
    x_t = jnp.transpose(x, (0, 2, 3, 1)).astype(jnp.float32)                   # (N, H, W, C)
    w_t = jnp.transpose(weight.reshape(C, K * K), (1, 0)).astype(jnp.float32)  # (K*K, C)
    b_t = bias.reshape(1, C).astype(jnp.float32)

    keep_thresh = 0
    call_args = [w_t, b_t, x_t]
    if apply_drop:
        scale = 1.0 / (1.0 - float(p))
        w_t = w_t * scale                     # fold 1/(1-p) into the tiny param tensors
        b_t = b_t * scale
        call_args = [w_t, b_t, x_t]
        keep_thresh = int(round(float(p) * (1 << 24)))
        if key is None:
            key = jax.random.PRNGKey(0)
        rbits = jax.random.bits(key, (N, H, W, C), dtype=jnp.uint32)
        rnd = (rbits >> 8).astype(jnp.int32)  # uniform in [0, 2^24)
        call_args.append(rnd)

    c_blk = _pick_c_block(C, H, W, pad, apply_drop)
    n_cb = C // c_blk

    img_spec = pl.BlockSpec((1, H, W, c_blk), lambda n, cb: (n, 0, 0, cb))
    in_specs = [
        pl.BlockSpec((K * K, c_blk), lambda n, cb: (0, cb)),   # weights
        pl.BlockSpec((1, c_blk), lambda n, cb: (0, cb)),       # bias
        img_spec,                                              # input
    ]
    if apply_drop:
        in_specs.append(img_spec)                              # dropout bits

    kernel = functools.partial(
        _depthconv_kernel,
        H=H, W=W, K=K, pad=pad, keep_thresh=keep_thresh, training=apply_drop,
    )

    grid_spec = pltpu.PrefetchScalarGridSpec(
        num_scalar_prefetch=0,
        grid=(N, n_cb),
        in_specs=in_specs,
        out_specs=img_spec,
        scratch_shapes=[pltpu.VMEM((Hp, Wp, c_blk), jnp.float32)],
    )

    out_nhwc = pl.pallas_call(
        kernel,
        grid_spec=grid_spec,
        out_shape=jax.ShapeDtypeStruct((N, H, W, C), jnp.float32),
        compiler_params=pltpu.CompilerParams(
            dimension_semantics=("parallel", "parallel"),
            vmem_limit_bytes=48 * 1024 * 1024,
        ),
    )(*call_args)

    return jnp.transpose(out_nhwc, (0, 3, 1, 2))


def _init_params(key, channels, kernel_size):
    """Deterministic init mimicking torch Conv2d: U(-b, b), b = 1/sqrt(fan_in)."""
    fan_in = kernel_size * kernel_size  # in_channels/groups == 1 for depthwise
    bound = 1.0 / np.sqrt(fan_in)
    kw, kb = jax.random.split(key)
    weight = jax.random.uniform(
        kw, (channels, 1, kernel_size, kernel_size),
        minval=-bound, maxval=bound, dtype=jnp.float32)
    bias = jax.random.uniform(
        kb, (channels,), minval=-bound, maxval=bound, dtype=jnp.float32)
    return weight, bias


if __name__ == "__main__":
    key = jax.random.PRNGKey(0)
    k_x, k_w, k_d = jax.random.split(key, 3)

    N, C, H, W, K = 2, 4, 16, 16, 3
    p = 0.3
    x = jax.random.normal(k_x, (N, C, H, W), dtype=jnp.float32)
    weight, bias = _init_params(k_w, C, K)

    # --- eval mode (dropout = identity): check conv against pure-JAX reference ---
    out_eval = jax.block_until_ready(depthconv2d(x, weight, bias, p=p, training=False))
    ref = jax.lax.conv_general_dilated(
        x, weight, window_strides=(1, 1), padding="SAME",
        dimension_numbers=("NCHW", "OIHW", "NCHW"),
        feature_group_count=C,
    ) + bias[None, :, None, None]
    np.testing.assert_allclose(np.asarray(out_eval), np.asarray(ref),
                               rtol=1e-5, atol=1e-5)

    # --- train mode: every element is either 0 (dropped) or ref/(1-p) (kept) ---
    out_train = jax.block_until_ready(
        depthconv2d(x, weight, bias, p=p, training=True, key=k_d))
    out_np, ref_np = np.asarray(out_train), np.asarray(ref)
    scaled = ref_np / (1.0 - p)
    is_drop = np.isclose(out_np, 0.0, atol=1e-6)
    is_keep = np.isclose(out_np, scaled, rtol=1e-4, atol=1e-5)
    assert out_np.shape == (N, C, H, W)
    assert np.all(np.isfinite(out_np))
    assert np.all(is_drop | is_keep)
    keep_frac = float(np.mean(~is_drop))
    assert 0.5 < keep_frac < 0.9, keep_frac

    print("KERNEL_OK")
</pallas_src>

<mosaic_0001>
module attributes {stable_mosaic.version = 11 : i64} {
  func.func @_depthconv_kernel(%arg0: i32, %arg1: i32, %arg2: memref<9x4xf32, #tpu.memory_space<vmem>>, %arg3: memref<1x4xf32, #tpu.memory_space<vmem>>, %arg4: memref<1x16x16x4xf32, #tpu.memory_space<vmem>>, %arg5: memref<1x16x16x4xf32, #tpu.memory_space<vmem>>, %arg6: memref<18x18x4xf32, #tpu.memory_space<vmem>>) attributes {dimension_semantics = [#tpu.dimension_semantics<parallel>, #tpu.dimension_semantics<parallel>], iteration_bounds = array<i64: 2, 1>, scalar_prefetch = 0 : i64, scratch_operands = 1 : i64, tpu.core_type = #tpu.core_type<tc>, window_params = [{transform_indices = @transform_0, window_bounds = array<i64: 9, 4>}, {transform_indices = @transform_1, window_bounds = array<i64: 1, 4>}, {transform_indices = @transform_2, window_bounds = array<i64: 1, 16, 16, 4>}, {transform_indices = @transform_3, window_bounds = array<i64: 1, 16, 16, 4>}]} {
    %cst = arith.constant 0.000000e+00 : f32
    %0 = vector.broadcast %cst : f32 to vector<18x18x4xf32>
    %c0 = arith.constant 0 : index
    %c0_0 = arith.constant 0 : index
    %c0_1 = arith.constant 0 : index
    %1 = vector.load %arg6[%c0, %c0_0, %c0_1] : memref<18x18x4xf32, #tpu.memory_space<vmem>>, vector<18x18x4xf32>
    tpu.vector_store %arg6[%c0, %c0_0, %c0_1], %0 {strides = array<i32>} : memref<18x18x4xf32, #tpu.memory_space<vmem>>, vector<18x18x4xf32>,
    %c0_2 = arith.constant 0 : index
    %c0_3 = arith.constant 0 : index
    %c0_4 = arith.constant 0 : index
    %c0_5 = arith.constant 0 : index
    %2 = vector.load %arg4[%c0_2, %c0_3, %c0_4, %c0_5] : memref<1x16x16x4xf32, #tpu.memory_space<vmem>>, vector<1x16x16x4xf32>
    %3 = vector.shape_cast %2 : vector<1x16x16x4xf32> to vector<16x16x4xf32>
    %c1 = arith.constant 1 : index
    %c1_6 = arith.constant 1 : index
    %c0_7 = arith.constant 0 : index
    %4 = vector.load %arg6[%c1, %c1_6, %c0_7] : memref<18x18x4xf32, #tpu.memory_space<vmem>>, vector<16x16x4xf32>
    tpu.vector_store %arg6[%c1, %c1_6, %c0_7], %3 {strides = array<i32>} : memref<18x18x4xf32, #tpu.memory_space<vmem>>, vector<16x16x4xf32>,
    %c0_8 = arith.constant 0 : index
    %c0_9 = arith.constant 0 : index
    %5 = vector.load %arg3[%c0_8, %c0_9] : memref<1x4xf32, #tpu.memory_space<vmem>>, vector<1x4xf32>
    %6 = vector.shape_cast %5 : vector<1x4xf32> to vector<4xf32>
    %7 = vector.shape_cast %6 : vector<4xf32> to vector<1x1x4xf32>
    %8 = vector.shape_cast %7 : vector<1x1x4xf32> to vector<1x1x4xf32>
    %9 = vector.broadcast %8 : vector<1x1x4xf32> to vector<16x16x4xf32>
    %c0_10 = arith.constant 0 : index
    %c0_11 = arith.constant 0 : index
    %10 = vector.load %arg2[%c0_10, %c0_11] : memref<9x4xf32, #tpu.memory_space<vmem>>, vector<1x4xf32>
    %11 = vector.shape_cast %10 : vector<1x4xf32> to vector<4xf32>
    %c0_12 = arith.constant 0 : index
    %c0_13 = arith.constant 0 : index
    %c0_14 = arith.constant 0 : index
    %12 = vector.load %arg6[%c0_12, %c0_13, %c0_14] : memref<18x18x4xf32, #tpu.memory_space<vmem>>, vector<16x16x4xf32>
    %13 = vector.shape_cast %11 : vector<4xf32> to vector<1x1x4xf32>
    %14 = vector.broadcast %13 : vector<1x1x4xf32> to vector<16x16x4xf32>
    %15 = arith.mulf %12, %14 : vector<16x16x4xf32>
    %16 = arith.addf %9, %15 : vector<16x16x4xf32>
    %c1_15 = arith.constant 1 : index
    %c0_16 = arith.constant 0 : index
    %17 = vector.load %arg2[%c1_15, %c0_16] : memref<9x4xf32, #tpu.memory_space<vmem>>, vector<1x4xf32>
    %18 = vector.shape_cast %17 : vector<1x4xf32> to vector<4xf32>
    %c0_17 = arith.constant 0 : index
    %c1_18 = arith.constant 1 : index
    %c0_19 = arith.constant 0 : index
    %19 = vector.load %arg6[%c0_17, %c1_18, %c0_19] : memref<18x18x4xf32, #tpu.memory_space<vmem>>, vector<16x16x4xf32>
    %20 = vector.shape_cast %18 : vector<4xf32> to vector<1x1x4xf32>
    %21 = vector.broadcast %20 : vector<1x1x4xf32> to vector<16x16x4xf32>
    %22 = arith.mulf %19, %21 : vector<16x16x4xf32>
    %23 = arith.addf %16, %22 : vector<16x16x4xf32>
    %c2 = arith.constant 2 : index
    %c0_20 = arith.constant 0 : index
    %24 = vector.load %arg2[%c2, %c0_20] : memref<9x4xf32, #tpu.memory_space<vmem>>, vector<1x4xf32>
    %25 = vector.shape_cast %24 : vector<1x4xf32> to vector<4xf32>
    %c0_21 = arith.constant 0 : index
    %c2_22 = arith.constant 2 : index
    %c0_23 = arith.constant 0 : index
    %26 = vector.load %arg6[%c0_21, %c2_22, %c0_23] : memref<18x18x4xf32, #tpu.memory_space<vmem>>, vector<16x16x4xf32>
    %27 = vector.shape_cast %25 : vector<4xf32> to vector<1x1x4xf32>
    %28 = vector.broadcast %27 : vector<1x1x4xf32> to vector<16x16x4xf32>
    %29 = arith.mulf %26, %28 : vector<16x16x4xf32>
    %30 = arith.addf %23, %29 : vector<16x16x4xf32>
    %c3 = arith.constant 3 : index
    %c0_24 = arith.constant 0 : index
    %31 = vector.load %arg2[%c3, %c0_24] : memref<9x4xf32, #tpu.memory_space<vmem>>, vector<1x4xf32>
    %32 = vector.shape_cast %31 : vector<1x4xf32> to vector<4xf32>
    %c1_25 = arith.constant 1 : index
    %c0_26 = arith.constant 0 : index
    %c0_27 = arith.constant 0 : index
    %33 = vector.load %arg6[%c1_25, %c0_26, %c0_27] : memref<18x18x4xf32, #tpu.memory_space<vmem>>, vector<16x16x4xf32>
    %34 = vector.shape_cast %32 : vector<4xf32> to vector<1x1x4xf32>
    %35 = vector.broadcast %34 : vector<1x1x4xf32> to vector<16x16x4xf32>
    %36 = arith.mulf %33, %35 : vector<16x16x4xf32>
    %37 = arith.addf %30, %36 : vector<16x16x4xf32>
    %c4 = arith.constant 4 : index
    %c0_28 = arith.constant 0 : index
    %38 = vector.load %arg2[%c4, %c0_28] : memref<9x4xf32, #tpu.memory_space<vmem>>, vector<1x4xf32>
    %39 = vector.shape_cast %38 : vector<1x4xf32> to vector<4xf32>
    %c1_29 = arith.constant 1 : index
    %c1_30 = arith.constant 1 : index
    %c0_31 = arith.constant 0 : index
    %40 = vector.load %arg6[%c1_29, %c1_30, %c0_31] : memref<18x18x4xf32, #tpu.memory_space<vmem>>, vector<16x16x4xf32>
    %41 = vector.shape_cast %39 : vector<4xf32> to vector<1x1x4xf32>
    %42 = vector.broadcast %41 : vector<1x1x4xf32> to vector<16x16x4xf32>
    %43 = arith.mulf %40, %42 : vector<16x16x4xf32>
    %44 = arith.addf %37, %43 : vector<16x16x4xf32>
    %c5 = arith.constant 5 : index
    %c0_32 = arith.constant 0 : index
    %45 = vector.load %arg2[%c5, %c0_32] : memref<9x4xf32, #tpu.memory_space<vmem>>, vector<1x4xf32>
    %46 = vector.shape_cast %45 : vector<1x4xf32> to vector<4xf32>
    %c1_33 = arith.constant 1 : index
    %c2_34 = arith.constant 2 : index
    %c0_35 = arith.constant 0 : index
    %47 = vector.load %arg6[%c1_33, %c2_34, %c0_35] : memref<18x18x4xf32, #tpu.memory_space<vmem>>, vector<16x16x4xf32>
    %48 = vector.shape_cast %46 : vector<4xf32> to vector<1x1x4xf32>
    %49 = vector.broadcast %48 : vector<1x1x4xf32> to vector<16x16x4xf32>
    %50 = arith.mulf %47, %49 : vector<16x16x4xf32>
    %51 = arith.addf %44, %50 : vector<16x16x4xf32>
    %c6 = arith.constant 6 : index
    %c0_36 = arith.constant 0 : index
    %52 = vector.load %arg2[%c6, %c0_36] : memref<9x4xf32, #tpu.memory_space<vmem>>, vector<1x4xf32>
    %53 = vector.shape_cast %52 : vector<1x4xf32> to vector<4xf32>
    %c2_37 = arith.constant 2 : index
    %c0_38 = arith.constant 0 : index
    %c0_39 = arith.constant 0 : index
    %54 = vector.load %arg6[%c2_37, %c0_38, %c0_39] : memref<18x18x4xf32, #tpu.memory_space<vmem>>, vector<16x16x4xf32>
    %55 = vector.shape_cast %53 : vector<4xf32> to vector<1x1x4xf32>
    %56 = vector.broadcast %55 : vector<1x1x4xf32> to vector<16x16x4xf32>
    %57 = arith.mulf %54, %56 : vector<16x16x4xf32>
    %58 = arith.addf %51, %57 : vector<16x16x4xf32>
    %c7 = arith.constant 7 : index
    %c0_40 = arith.constant 0 : index
    %59 = vector.load %arg2[%c7, %c0_40] : memref<9x4xf32, #tpu.memory_space<vmem>>, vector<1x4xf32>
    %60 = vector.shape_cast %59 : vector<1x4xf32> to vector<4xf32>
    %c2_41 = arith.constant 2 : index
    %c1_42 = arith.constant 1 : index
    %c0_43 = arith.constant 0 : index
    %61 = vector.load %arg6[%c2_41, %c1_42, %c0_43] : memref<18x18x4xf32, #tpu.memory_space<vmem>>, vector<16x16x4xf32>
    %62 = vector.shape_cast %60 : vector<4xf32> to vector<1x1x4xf32>
    %63 = vector.broadcast %62 : vector<1x1x4xf32> to vector<16x16x4xf32>
    %64 = arith.mulf %61, %63 : vector<16x16x4xf32>
    %65 = arith.addf %58, %64 : vector<16x16x4xf32>
    %c8 = arith.constant 8 : index
    %c0_44 = arith.constant 0 : index
    %66 = vector.load %arg2[%c8, %c0_44] : memref<9x4xf32, #tpu.memory_space<vmem>>, vector<1x4xf32>
    %67 = vector.shape_cast %66 : vector<1x4xf32> to vector<4xf32>
    %c2_45 = arith.constant 2 : index
    %c2_46 = arith.constant 2 : index
    %c0_47 = arith.constant 0 : index
    %68 = vector.load %arg6[%c2_45, %c2_46, %c0_47] : memref<18x18x4xf32, #tpu.memory_space<vmem>>, vector<16x16x4xf32>
    %69 = vector.shape_cast %67 : vector<4xf32> to vector<1x1x4xf32>
    %70 = vector.broadcast %69 : vector<1x1x4xf32> to vector<16x16x4xf32>
    %71 = arith.mulf %68, %70 : vector<16x16x4xf32>
    %72 = arith.addf %65, %71 : vector<16x16x4xf32>
    %c0_48 = arith.constant 0 : index
    %c0_49 = arith.constant 0 : index
    %c0_50 = arith.constant 0 : index
    %c0_51 = arith.constant 0 : index
    %73 = vector.load %arg5[%c0_48, %c0_49, %c0_50, %c0_51] : memref<1x16x16x4xf32, #tpu.memory_space<vmem>>, vector<1x16x16x4xf32>
    %74 = vector.shape_cast %73 : vector<1x16x16x4xf32> to vector<16x16x4xf32>
    %75 = vector.shape_cast %72 : vector<16x16x4xf32> to vector<1x16x16x4xf32>
    tpu.vector_store %arg5[%c0_48, %c0_49, %c0_50, %c0_51], %75 {strides = array<i32>} : memref<1x16x16x4xf32, #tpu.memory_space<vmem>>, vector<1x16x16x4xf32>,
    return
  }
  func.func @transform_0(%arg0: i32, %arg1: i32) -> (i32, i32) {
    %c0_i32 = arith.constant 0 : i32
    %c0_i32_0 = arith.constant 0 : i32
    return %c0_i32, %arg1 : i32, i32
  }
  func.func @transform_1(%arg0: i32, %arg1: i32) -> (i32, i32) {
    %c0_i32 = arith.constant 0 : i32
    %c0_i32_0 = arith.constant 0 : i32
    return %c0_i32, %arg1 : i32, i32
  }
  func.func @transform_2(%arg0: i32, %arg1: i32) -> (i32, i32, i32, i32) {
    %c0_i32 = arith.constant 0 : i32
    %c0_i32_0 = arith.constant 0 : i32
    %c0_i32_1 = arith.constant 0 : i32
    return %arg0, %c0_i32, %c0_i32_0, %arg1 : i32, i32, i32, i32
  }
  func.func @transform_3(%arg0: i32, %arg1: i32) -> (i32, i32, i32, i32) {
    %c0_i32 = arith.constant 0 : i32
    %c0_i32_0 = arith.constant 0 : i32
    %c0_i32_1 = arith.constant 0 : i32
    return %arg0, %c0_i32, %c0_i32_0, %arg1 : i32, i32, i32, i32
  }
}

</mosaic_0001>

<llo_original>
// kernel: tpu_custom_call.1
$region0: #{tpu_custom_call.1}
  #allocation0 [shape = 'u32[]', space=smem, size = 0x4, offset = 0x4, fixed_abs, tag = 'smem constant byte address 0x4 - core index']
  #allocation1 [shape = 'u32[144,128]{1,0:T(1,128)}', space=vmem, size = 0x12000, scoped, tag = 'internal scratch']
  #allocation2 [shape = 'f32[18,18,4]{2,1,0:T(8,128)}', space=vmem, size = 0x36000, scoped, tag = 'scratch operand']
  %s0 = inlined_call_operand.vmem [shape: f32[9,4], index: 0, kind: input, shape index: {}]
  %s1 = inlined_call_operand.vmem [shape: f32[1,4], index: 1, kind: input, shape index: {}]
  %s2 = inlined_call_operand.vmem [shape: f32[2,16,16,4], index: 2, kind: input, shape index: {}]
  %s3 = inlined_call_operand.vmem [shape: f32[2,16,16,4], index: 3, kind: output, shape index: {}]
  %s4 = sld [smem:[#allocation0]]
  $region45: #{tpu_custom_call.1} parent=0
    _
  %s6 = ssub.s32 1, %s4
  %s7 = scalar_select 0, %s6, %s4
  loop: start=0, step=1, limit=4
  $region2: #{tpu_custom_call.1} parent=0 // loop_pre_header
    _
  $region3: #{tpu_custom_call.1} parent=0 // loop_header
    %s9 = sphi 0, %s13
    %p10 = scmp.ge.s32.totalorder %s9, 4
    %s16 = sphi 0, %s28
    %s17 = sphi 0, %s24
    %s18 = sphi 0, %s16
    %s19 = sphi 0, %s17
    %s20 = sphi 0, %s18
    %s21 = sphi 0, %s19
    %s31 = sphi 0, %s33
    %s34 = sphi 0, %s31
    %s35 = sphi 0, %s34
    %s51 = sphi 0, %s35
    %s57 = sphi 0, %s59
    %s60 = sphi 0, %s57
    %s61 = sphi 0, %s60
    %s77 = sphi 0, %s61
    %s85 = sphi 0, %s87
    %s88 = sphi 0, %s85
    %s89 = sphi 0, %s88
    %s105 = sphi 0, %s89
    %s113 = sphi 0, %s115
    %s116 = sphi 0, %s113
    %s117 = sphi 0, %s116
    %s133 = sphi 0, %s117
  $region4: #{tpu_custom_call.1} parent=0 // loop_header_branch
    %12 = sbr.rel (%p10) target = $region8
  $region5: #{tpu_custom_call.1} parent=0 // loop_body
    %s14 = ssub.s32 %s9, 1
    %s15 = ssub.s32 %s9, 2
    %s22 = sadd.s32 1, %s17
    %p23 = scmp.ge.s32.totalorder %s22, 1
    %s24 = scalar_select %p23, 0, %s22
    %s25 = sadd.s32 1, %s16
    %s26 = scalar_select %p23, %s25, %s16
    %p27 = scmp.ge.s32.totalorder %s26, 2
    %s28 = scalar_select %p27, 0, %s26
    %s29 = ssub.s32 %s17, %s24
    %p30 = scmp.eq.s32.totalorder %s29, 0
    %s32 = sadd.s32 %s31, 1
    %s33 = scalar_select %p30, %s31, %s32
    %p36 = pneg %p30
    %p37 = scmp.eq.s32.totalorder %s9, 1
    %p38 = por %p36, %p37
    %p39 = scmp.ne.s32.totalorder %s31, %s34
    %p40 = scmp.eq.s32.totalorder %s9, 0
    %p41 = por %p39, %p40
    %p42 = scmp.ne.s32.totalorder %s31, %s34
    %p43 = scmp.eq.s32.totalorder %s14, 1
    %p44 = por %p42, %p43
    %p45 = scmp.ne.s32.totalorder %s34, %s35
    %p46 = scmp.eq.s32.totalorder %s14, 0
    %p47 = por %p45, %p46
    %p48 = scmp.ne.s32.totalorder %s34, %s35
    %p49 = scmp.eq.s32.totalorder %s15, 1
    %p50 = por %p48, %p49
    %p52 = scmp.ne.s32.totalorder %s35, %s51
    %p53 = scmp.eq.s32.totalorder %s15, 0
    %p54 = por %p52, %p53
    %s55 = ssub.s32 %s17, %s24
    %p56 = scmp.eq.s32.totalorder %s55, 0
    %s58 = sadd.s32 %s57, 1
    %s59 = scalar_select %p56, %s57, %s58
    %p62 = pneg %p56
    %p63 = scmp.eq.s32.totalorder %s9, 1
    %p64 = por %p62, %p63
    %p65 = scmp.ne.s32.totalorder %s57, %s60
    %p66 = scmp.eq.s32.totalorder %s9, 0
    %p67 = por %p65, %p66
    %p68 = scmp.ne.s32.totalorder %s57, %s60
    %p69 = scmp.eq.s32.totalorder %s14, 1
    %p70 = por %p68, %p69
    %p71 = scmp.ne.s32.totalorder %s60, %s61
    %p72 = scmp.eq.s32.totalorder %s14, 0
    %p73 = por %p71, %p72
    %p74 = scmp.ne.s32.totalorder %s60, %s61
    %p75 = scmp.eq.s32.totalorder %s15, 1
    %p76 = por %p74, %p75
    %p78 = scmp.ne.s32.totalorder %s61, %s77
    %p79 = scmp.eq.s32.totalorder %s15, 0
    %p80 = por %p78, %p79
    %s81 = ssub.s32 %s16, %s28
    %s82 = ssub.s32 %s17, %s24
    %s83 = sor.u32 %s81, %s82
    %p84 = scmp.eq.s32.totalorder %s83, 0
    %s86 = sadd.s32 %s85, 1
    %s87 = scalar_select %p84, %s85, %s86
    %p90 = pneg %p84
    %p91 = scmp.eq.s32.totalorder %s9, 1
    %p92 = por %p90, %p91
    %p93 = scmp.ne.s32.totalorder %s85, %s88
    %p94 = scmp.eq.s32.totalorder %s9, 0
    %p95 = por %p93, %p94
    %p96 = scmp.ne.s32.totalorder %s85, %s88
    %p97 = scmp.eq.s32.totalorder %s14, 1
    %p98 = por %p96, %p97
    %p99 = scmp.ne.s32.totalorder %s88, %s89
    %p100 = scmp.eq.s32.totalorder %s14, 0
    %p101 = por %p99, %p100
    %p102 = scmp.ne.s32.totalorder %s88, %s89
    %p103 = scmp.eq.s32.totalorder %s15, 1
    %p104 = por %p102, %p103
    %p106 = scmp.ne.s32.totalorder %s89, %s105
    %p107 = scmp.eq.s32.totalorder %s15, 0
    %p108 = por %p106, %p107
    %s109 = ssub.s32 %s16, %s28
    %s110 = ssub.s32 %s17, %s24
    %s111 = sor.u32 %s109, %s110
    %p112 = scmp.eq.s32.totalorder %s111, 0
    %s114 = sadd.s32 %s113, 1
    %s115 = scalar_select %p112, %s113, %s114
    %p118 = pneg %p112
    %p119 = scmp.eq.s32.totalorder %s9, 1
    %p120 = por %p118, %p119
    %p121 = scmp.ne.s32.totalorder %s113, %s116
    %p122 = scmp.eq.s32.totalorder %s9, 0
    %p123 = por %p121, %p122
    %p124 = scmp.ne.s32.totalorder %s113, %s116
    %p125 = scmp.eq.s32.totalorder %s14, 1
    %p126 = por %p124, %p125
    %p127 = scmp.ne.s32.totalorder %s116, %s117
    %p128 = scmp.eq.s32.totalorder %s14, 0
    %p129 = por %p127, %p128
    %p130 = scmp.ne.s32.totalorder %s116, %s117
    %p131 = scmp.eq.s32.totalorder %s15, 1
    %p132 = por %p130, %p131
    %p134 = scmp.ne.s32.totalorder %s117, %s133
    %p135 = scmp.eq.s32.totalorder %s15, 0
    %p136 = por %p134, %p135
    %p137 = scmp.le.s32.totalorder 1, %s9
    %p138 = scmp.lt.s32.totalorder %s9, 3
    %p139 = pnand %p137, %p138
    %p140 = pneg %p139
    // Predicated region
    $region9: #{tpu_custom_call.1} parent=5 // pred_check
      _
    $region10: #{tpu_custom_call.1} parent=5 // pred_check_branch
      %142 = sbr.rel (%p139) target = $region12
    $region11: #{tpu_custom_call.1} parent=5 // pred_region
      %s143 = ssub.s32 %s9, 1
      // Predicated region
      $region13: #{tpu_custom_call.1} parent=11 // pred_check
        %p144 = pneg %p47
      $region14: #{tpu_custom_call.1} parent=11 // pred_check_branch
        %146 = sbr.rel (%p144) target = $region16
      $region15: #{tpu_custom_call.1} parent=11 // pred_region
        %p147 = scmp.lt.s32.totalorder %s19, 0
        %s148 = scalar_select %p147, %s19, 0
        %s149 = smul.addr %s148, 8
        %s150 = scalar_lea.vmem %s0, %s149
      $region16: #{tpu_custom_call.1} parent=11 // pred_fallthru
        _
      // Predicated region
      $region17: #{tpu_custom_call.1} parent=11 // pred_check
        %p151 = pneg %p73
      $region18: #{tpu_custom_call.1} parent=11 // pred_check_branch
        %153 = sbr.rel (%p151) target = $region20
      $region19: #{tpu_custom_call.1} parent=11 // pred_region
        %p154 = scmp.lt.s32.totalorder %s19, 0
        %s155 = scalar_select %p154, %s19, 0
        %s156 = scalar_lea.vmem %s1, %s155
      $region20: #{tpu_custom_call.1} parent=11 // pred_fallthru
        _
    $region12: #{tpu_custom_call.1} parent=5 // pred_fallthru
      _
    %p157 = scmp.lt.s32.totalorder %s9, 2
    // Predicated region
    $region21: #{tpu_custom_call.1} parent=5 // pred_check
      %p158 = pneg %p157
    $region22: #{tpu_custom_call.1} parent=5 // pred_check_branch
      %160 = sbr.rel (%p158) target = $region24
    $region23: #{tpu_custom_call.1} parent=5 // pred_region
      // Predicated region
      $region25: #{tpu_custom_call.1} parent=23 // pred_check
        %p161 = pneg %p95
      $region26: #{tpu_custom_call.1} parent=23 // pred_check_branch
        %163 = sbr.rel (%p161) target = $region28
      $region27: #{tpu_custom_call.1} parent=23 // pred_region
        %p164 = scmp.lt.s32.totalorder %s16, 1
        %s165 = scalar_select %p164, %s16, 1
        %p166 = scmp.lt.s32.totalorder %s17, 0
        %s167 = scalar_select %p166, %s17, 0
        %s168 = smul.addr %s165, 32
        %s169 = sadd.s32 %s167, %s168
        %s170 = smul.addr %s169, 8
        %s171 = scalar_lea.vmem %s2, %s170
      $region28: #{tpu_custom_call.1} parent=23 // pred_fallthru
        _
    $region24: #{tpu_custom_call.1} parent=5 // pred_fallthru
      _
    %p172 = scmp.le.s32.totalorder 1, %s9
    %p173 = scmp.lt.s32.totalorder %s9, 3
    %p174 = pnand %p172, %p173
    %p175 = pneg %p174
    // Predicated region
    $region29: #{tpu_custom_call.1} parent=5 // pred_check
      _
    $region30: #{tpu_custom_call.1} parent=5 // pred_check_branch
      %177 = sbr.rel (%p174) target = $region32
    $region31: #{tpu_custom_call.1} parent=5 // pred_region
      %s178 = ssub.s32 %s9, 1
      %p179 = scmp.lt.s32.totalorder %s19, 0
      %s180 = scalar_select %p179, %s19, 0
      %s181 = smul.addr %s180, 8
      %s182 = scalar_lea.vmem %s0, %s181
      %p183 = pneg %p47
      %p184 = pneg %p44
      %p185 = scmp.lt.s32.totalorder %s19, 0
      %s186 = scalar_select %p185, %s19, 0
      %s187 = scalar_lea.vmem %s1, %s186
      %p188 = pneg %p73
      %p189 = pneg %p70
      %p190 = scmp.lt.s32.totalorder %s18, 1
      %s191 = scalar_select %p190, %s18, 1
      %p192 = scmp.lt.s32.totalorder %s19, 0
      %s193 = scalar_select %p192, %s19, 0
      %s194 = smul.addr %s191, 32
      %s195 = sadd.s32 %s193, %s194
      %s196 = smul.addr %s195, 8
      %s197 = scalar_lea.vmem %s2, %s196
      %p198 = pneg %p101
      %p199 = pneg %p98
      %p200 = pneg %p129
      %p201 = pneg %p126
      %p202 = scmp.lt.s32.totalorder %s18, 1
      %s203 = scalar_select %p202, %s18, 1
      %p204 = scmp.lt.s32.totalorder %s19, 0
      %s205 = scalar_select %p204, %s19, 0
      %s206 = smul.addr %s203, 32
      %s207 = sadd.s32 %s205, %s206
      %s208 = smul.addr %s207, 8
      %s209 = scalar_lea.vmem %s3, %s208
      %p210 = scmp.lt.s32.totalorder %s19, 0
      %s211 = scalar_select %p210, %s19, 0
      %s212 = smul.addr %s211, 8
      %s213 = scalar_lea.vmem %s0, %s212
      %p214 = scmp.lt.s32.totalorder %s19, 0
      %s215 = scalar_select %p214, %s19, 0
      %s216 = scalar_lea.vmem %s1, %s215
      %p217 = scmp.lt.s32.totalorder %s18, 1
      %s218 = scalar_select %p217, %s18, 1
      %p219 = scmp.lt.s32.totalorder %s19, 0
      %s220 = scalar_select %p219, %s19, 0
      %s221 = smul.addr %s218, 32
      %s222 = sadd.s32 %s220, %s221
      %s223 = smul.addr %s222, 8
      %s224 = scalar_lea.vmem %s2, %s223
      %p225 = scmp.lt.s32.totalorder %s18, 1
      %s226 = scalar_select %p225, %s18, 1
      %p227 = scmp.lt.s32.totalorder %s19, 0
      %s228 = scalar_select %p227, %s19, 0
      %s229 = smul.addr %s226, 32
      %s230 = sadd.s32 %s228, %s229
      %s231 = smul.addr %s230, 8
      %s232 = scalar_lea.vmem %s3, %s231
      %vm233 = vcmask 31744
      %234 = vst.msk [vmem:[#allocation2] sm:$0xff] %vm233, 0.0
      %235 = vst.msk [vmem:[#allocation2 + $0x8] sm:$0xff] %vm233, 0.0
      %vm236 = vcmask 25600
      %237 = vst.msk [vmem:[#allocation2 + $0x10] sm:$0x3] %vm236, 0.0
      %238 = vst.msk [vmem:[#allocation2 + $0x18] sm:$0xff] %vm233, 0.0
      %239 = vst.msk [vmem:[#allocation2 + $0x20] sm:$0xff] %vm233, 0.0
      %240 = vst.msk [vmem:[#allocation2 + $0x28] sm:$0x3] %vm236, 0.0
      %241 = vst.msk [vmem:[#allocation2 + $0x30] sm:$0xff] %vm233, 0.0
      %242 = vst.msk [vmem:[#allocation2 + $0x38] sm:$0xff] %vm233, 0.0
      %243 = vst.msk [vmem:[#allocation2 + $0x40] sm:$0x3] %vm236, 0.0
      %244 = vst.msk [vmem:[#allocation2 + $0x48] sm:$0xff] %vm233, 0.0
      %245 = vst.msk [vmem:[#allocation2 + $0x50] sm:$0xff] %vm233, 0.0
      %246 = vst.msk [vmem:[#allocation2 + $0x58] sm:$0x3] %vm236, 0.0
      %247 = vst.msk [vmem:[#allocation2 + $0x60] sm:$0xff] %vm233, 0.0
      %248 = vst.msk [vmem:[#allocation2 + $0x68] sm:$0xff] %vm233, 0.0
      %249 = vst.msk [vmem:[#allocation2 + $0x70] sm:$0x3] %vm236, 0.0
      %250 = vst.msk [vmem:[#allocation2 + $0x78] sm:$0xff] %vm233, 0.0
      %251 = vst.msk [vmem:[#allocation2 + $0x80] sm:$0xff] %vm233, 0.0
      %252 = vst.msk [vmem:[#allocation2 + $0x88] sm:$0x3] %vm236, 0.0
      %253 = vst.msk [vmem:[#allocation2 + $0x90] sm:$0xff] %vm233, 0.0
      %254 = vst.msk [vmem:[#allocation2 + $0x98] sm:$0xff] %vm233, 0.0
      %255 = vst.msk [vmem:[#allocation2 + $0xa0] sm:$0x3] %vm236, 0.0
      %256 = vst.msk [vmem:[#allocation2 + $0xa8] sm:$0xff] %vm233, 0.0
      %257 = vst.msk [vmem:[#allocation2 + $0xb0] sm:$0xff] %vm233, 0.0
      %258 = vst.msk [vmem:[#allocation2 + $0xb8] sm:$0x3] %vm236, 0.0
      %259 = vst.msk [vmem:[#allocation2 + $0xc0] sm:$0xff] %vm233, 0.0
      %260 = vst.msk [vmem:[#allocation2 + $0xc8] sm:$0xff] %vm233, 0.0
      %261 = vst.msk [vmem:[#allocation2 + $0xd0] sm:$0x3] %vm236, 0.0
      %262 = vst.msk [vmem:[#allocation2 + $0xd8] sm:$0xff] %vm233, 0.0
      %263 = vst.msk [vmem:[#allocation2 + $0xe0] sm:$0xff] %vm233, 0.0
      %264 = vst.msk [vmem:[#allocation2 + $0xe8] sm:$0x3] %vm236, 0.0
      %265 = vst.msk [vmem:[#allocation2 + $0xf0] sm:$0xff] %vm233, 0.0
      %266 = vst.msk [vmem:[#allocation2 + $0xf8] sm:$0xff] %vm233, 0.0
      %267 = vst.msk [vmem:[#allocation2 + $0x100] sm:$0x3] %vm236, 0.0
      %268 = vst.msk [vmem:[#allocation2 + $0x108] sm:$0xff] %vm233, 0.0
      %269 = vst.msk [vmem:[#allocation2 + $0x110] sm:$0xff] %vm233, 0.0
      %270 = vst.msk [vmem:[#allocation2 + $0x118] sm:$0x3] %vm236, 0.0
      %271 = vst.msk [vmem:[#allocation2 + $0x120] sm:$0xff] %vm233, 0.0
      %272 = vst.msk [vmem:[#allocation2 + $0x128] sm:$0xff] %vm233, 0.0
      %273 = vst.msk [vmem:[#allocation2 + $0x130] sm:$0x3] %vm236, 0.0
      %274 = vst.msk [vmem:[#allocation2 + $0x138] sm:$0xff] %vm233, 0.0
      %275 = vst.msk [vmem:[#allocation2 + $0x140] sm:$0xff] %vm233, 0.0
      %276 = vst.msk [vmem:[#allocation2 + $0x148] sm:$0x3] %vm236, 0.0
      %277 = vst.msk [vmem:[#allocation2 + $0x150] sm:$0xff] %vm233, 0.0
      %278 = vst.msk [vmem:[#allocation2 + $0x158] sm:$0xff] %vm233, 0.0
      %279 = vst.msk [vmem:[#allocation2 + $0x160] sm:$0x3] %vm236, 0.0
      %280 = vst.msk [vmem:[#allocation2 + $0x168] sm:$0xff] %vm233, 0.0
      %281 = vst.msk [vmem:[#allocation2 + $0x170] sm:$0xff] %vm233, 0.0
      %282 = vst.msk [vmem:[#allocation2 + $0x178] sm:$0x3] %vm236, 0.0
      %283 = vst.msk [vmem:[#allocation2 + $0x180] sm:$0xff] %vm233, 0.0
      %284 = vst.msk [vmem:[#allocation2 + $0x188] sm:$0xff] %vm233, 0.0
      %285 = vst.msk [vmem:[#allocation2 + $0x190] sm:$0x3] %vm236, 0.0
      %286 = vst.msk [vmem:[#allocation2 + $0x198] sm:$0xff] %vm233, 0.0
      %287 = vst.msk [vmem:[#allocation2 + $0x1a0] sm:$0xff] %vm233, 0.0
      %288 = vst.msk [vmem:[#allocation2 + $0x1a8] sm:$0x3] %vm236, 0.0
      %v289 = vld [vmem:[%s224] sm:$0xff]
      %v290 = vld [vmem:[%s224 + $0x8] sm:$0xff]
      %v291 = vld [vmem:[%s224 + $0x10] sm:$0xff]
      %v292 = vld [vmem:[%s224 + $0x18] sm:$0xff]
      %v293 = vld [vmem:[%s224 + $0x20] sm:$0xff]
      %v294 = vld [vmem:[%s224 + $0x28] sm:$0xff]
      %v295 = vld [vmem:[%s224 + $0x30] sm:$0xff]
      %v296 = vld [vmem:[%s224 + $0x38] sm:$0xff]
      %v297 = vld [vmem:[%s224 + $0x40] sm:$0xff]
      %v298 = vld [vmem:[%s224 + $0x48] sm:$0xff]
      %v299 = vld [vmem:[%s224 + $0x50] sm:$0xff]
      %v300 = vld [vmem:[%s224 + $0x58] sm:$0xff]
      %v301 = vld [vmem:[%s224 + $0x60] sm:$0xff]
      %v302 = vld [vmem:[%s224 + $0x68] sm:$0xff]
      %v303 = vld [vmem:[%s224 + $0x70] sm:$0xff]
      %v304 = vld [vmem:[%s224 + $0x78] sm:$0xff]
      %v305 = vld [vmem:[%s224 + $0x80] sm:$0xff]
      %v306 = vld [vmem:[%s224 + $0x88] sm:$0xff]
      %v307 = vld [vmem:[%s224 + $0x90] sm:$0xff]
      %v308 = vld [vmem:[%s224 + $0x98] sm:$0xff]
      %v309 = vld [vmem:[%s224 + $0xa0] sm:$0xff]
      %v310 = vld [vmem:[%s224 + $0xa8] sm:$0xff]
      %v311 = vld [vmem:[%s224 + $0xb0] sm:$0xff]
      %v312 = vld [vmem:[%s224 + $0xb8] sm:$0xff]
      %v313 = vld [vmem:[%s224 + $0xc0] sm:$0xff]
      %v314 = vld [vmem:[%s224 + $0xc8] sm:$0xff]
      %v315 = vld [vmem:[%s224 + $0xd0] sm:$0xff]
      %v316 = vld [vmem:[%s224 + $0xd8] sm:$0xff]
      %v317 = vld [vmem:[%s224 + $0xe0] sm:$0xff]
      %v318 = vld [vmem:[%s224 + $0xe8] sm:$0xff]
      %v319 = vld [vmem:[%s224 + $0xf0] sm:$0xff]
      %v320 = vld [vmem:[%s224 + $0xf8] sm:$0xff]
      %s321 = scalar_lea.vmem [#allocation2], 24
      %322 = vst.msk [vmem:[%s321 + $0x1] sm:$0xff] %vm233, %v289
      %323 = vst.msk [vmem:[%s321 + $0x9] sm:$0xff] %vm233, %v290
      %324 = vst.msk [vmem:[%s321 + $0x19] sm:$0xff] %vm233, %v291
      %325 = vst.msk [vmem:[%s321 + $0x21] sm:$0xff] %vm233, %v292
      %326 = vst.msk [vmem:[%s321 + $0x31] sm:$0xff] %vm233, %v293
      %327 = vst.msk [vmem:[%s321 + $0x39] sm:$0xff] %vm233, %v294
      %328 = vst.msk [vmem:[%s321 + $0x49] sm:$0xff] %vm233, %v295
      %329 = vst.msk [vmem:[%s321 + $0x51] sm:$0xff] %vm233, %v296
      %330 = vst.msk [vmem:[%s321 + $0x61] sm:$0xff] %vm233, %v297
      %331 = vst.msk [vmem:[%s321 + $0x69] sm:$0xff] %vm233, %v298
      %332 = vst.msk [vmem:[%s321 + $0x79] sm:$0xff] %vm233, %v299
      %333 = vst.msk [vmem:[%s321 + $0x81] sm:$0xff] %vm233, %v300
      %334 = vst.msk [vmem:[%s321 + $0x91] sm:$0xff] %vm233, %v301
      %335 = vst.msk [vmem:[%s321 + $0x99] sm:$0xff] %vm233, %v302
      %336 = vst.msk [vmem:[%s321 + $0xa9] sm:$0xff] %vm233, %v303
      %337 = vst.msk [vmem:[%s321 + $0xb1] sm:$0xff] %vm233, %v304
      %338 = vst.msk [vmem:[%s321 + $0xc1] sm:$0xff] %vm233, %v305
      %339 = vst.msk [vmem:[%s321 + $0xc9] sm:$0xff] %vm233, %v306
      %340 = vst.msk [vmem:[%s321 + $0xd9] sm:$0xff] %vm233, %v307
      %341 = vst.msk [vmem:[%s321 + $0xe1] sm:$0xff] %vm233, %v308
      %342 = vst.msk [vmem:[%s321 + $0xf1] sm:$0xff] %vm233, %v309
      %343 = vst.msk [vmem:[%s321 + $0xf9] sm:$0xff] %vm233, %v310
      %344 = vst.msk [vmem:[%s321 + $0x109] sm:$0xff] %vm233, %v311
      %345 = vst.msk [vmem:[%s321 + $0x111] sm:$0xff] %vm233, %v312
      %346 = vst.msk [vmem:[%s321 + $0x121] sm:$0xff] %vm233, %v313
      %347 = vst.msk [vmem:[%s321 + $0x129] sm:$0xff] %vm233, %v314
      %348 = vst.msk [vmem:[%s321 + $0x139] sm:$0xff] %vm233, %v315
      %349 = vst.msk [vmem:[%s321 + $0x141] sm:$0xff] %vm233, %v316
      %350 = vst.msk [vmem:[%s321 + $0x151] sm:$0xff] %vm233, %v317
      %351 = vst.msk [vmem:[%s321 + $0x159] sm:$0xff] %vm233, %v318
      %352 = vst.msk [vmem:[%s321 + $0x169] sm:$0xff] %vm233, %v319
      %353 = vst.msk [vmem:[%s321 + $0x171] sm:$0xff] %vm233, %v320
      %v354 = vld [vmem:[%s216] sm:$0x1]
      %v356 = vlaneseq
      %v357 = vshrl.u32 %v356, 7
      %v358 = vsub.s32 0, %v357
      %v359 = vrot.slane %v354, %v358
      %v361 = vld [vmem:[%s213] sm:$0x1]
      %v362 = vld [vmem:[#allocation2] sm:$0xff]
      %v363 = vld [vmem:[#allocation2 + $0x8] sm:$0xff]
      %v364 = vld [vmem:[#allocation2 + $0x18] sm:$0xff]
      %v365 = vld [vmem:[#allocation2 + $0x20] sm:$0xff]
      %v366 = vld [vmem:[#allocation2 + $0x30] sm:$0xff]
      %v367 = vld [vmem:[#allocation2 + $0x38] sm:$0xff]
      %v368 = vld [vmem:[#allocation2 + $0x48] sm:$0xff]
      %v369 = vld [vmem:[#allocation2 + $0x50] sm:$0xff]
      %v370 = vld [vmem:[#allocation2 + $0x60] sm:$0xff]
      %v371 = vld [vmem:[#allocation2 + $0x68] sm:$0xff]
      %v372 = vld [vmem:[#allocation2 + $0x78] sm:$0xff]
      %v373 = vld [vmem:[#allocation2 + $0x80] sm:$0xff]
      %v374 = vld [vmem:[#allocation2 + $0x90] sm:$0xff]
      %v375 = vld [vmem:[#allocation2 + $0x98] sm:$0xff]
      %v376 = vld [vmem:[#allocation2 + $0xa8] sm:$0xff]
      %v377 = vld [vmem:[#allocation2 + $0xb0] sm:$0xff]
      %v378 = vld [vmem:[#allocation2 + $0xc0] sm:$0xff]
      %v379 = vld [vmem:[#allocation2 + $0xc8] sm:$0xff]
      %v380 = vld [vmem:[#allocation2 + $0xd8] sm:$0xff]
      %v381 = vld [vmem:[#allocation2 + $0xe0] sm:$0xff]
      %v382 = vld [vmem:[#allocation2 + $0xf0] sm:$0xff]
      %v383 = vld [vmem:[#allocation2 + $0xf8] sm:$0xff]
      %v384 = vld [vmem:[#allocation2 + $0x108] sm:$0xff]
      %v385 = vld [vmem:[#allocation2 + $0x110] sm:$0xff]
      %v386 = vld [vmem:[#allocation2 + $0x120] sm:$0xff]
      %v387 = vld [vmem:[#allocation2 + $0x128] sm:$0xff]
      %v388 = vld [vmem:[#allocation2 + $0x138] sm:$0xff]
      %v389 = vld [vmem:[#allocation2 + $0x140] sm:$0xff]
      %v390 = vld [vmem:[#allocation2 + $0x150] sm:$0xff]
      %v391 = vld [vmem:[#allocation2 + $0x158] sm:$0xff]
      %v392 = vld [vmem:[#allocation2 + $0x168] sm:$0xff]
      %v393 = vld [vmem:[#allocation2 + $0x170] sm:$0xff]
      %v394 = vlaneseq
      %v395 = vshrl.u32 %v394, 7
      %v396 = vsub.s32 0, %v395
      %v397 = vrot.slane %v361, %v396
      %v398 = vmul.f32 %v362, %v397
      %v399 = vmul.f32 %v363, %v397
      %v400 = vmul.f32 %v364, %v397
      %v401 = vmul.f32 %v365, %v397
      %v402 = vmul.f32 %v366, %v397
      %v403 = vmul.f32 %v367, %v397
      %v404 = vmul.f32 %v368, %v397
      %v405 = vmul.f32 %v369, %v397
      %v406 = vmul.f32 %v370, %v397
      %v407 = vmul.f32 %v371, %v397
      %v408 = vmul.f32 %v372, %v397
      %v409 = vmul.f32 %v373, %v397
      %v410 = vmul.f32 %v374, %v397
      %v411 = vmul.f32 %v375, %v397
      %v412 = vmul.f32 %v376, %v397
      %v413 = vmul.f32 %v377, %v397
      %v414 = vmul.f32 %v378, %v397
      %v415 = vmul.f32 %v379, %v397
      %v416 = vmul.f32 %v380, %v397
      %v417 = vmul.f32 %v381, %v397
      %v418 = vmul.f32 %v382, %v397
      %v419 = vmul.f32 %v383, %v397
      %v420 = vmul.f32 %v384, %v397
      %v421 = vmul.f32 %v385, %v397
      %v422 = vmul.f32 %v386, %v397
      %v423 = vmul.f32 %v387, %v397
      %v424 = vmul.f32 %v388, %v397
      %v425 = vmul.f32 %v389, %v397
      %v426 = vmul.f32 %v390, %v397
      %v427 = vmul.f32 %v391, %v397
      %v428 = vmul.f32 %v392, %v397
      %v429 = vmul.f32 %v393, %v397
      %v430 = vadd.f32 %v359, %v398
      %v431 = vadd.f32 %v359, %v399
      %v432 = vadd.f32 %v359, %v400
      %v433 = vadd.f32 %v359, %v401
      %v434 = vadd.f32 %v359, %v402
      %v435 = vadd.f32 %v359, %v403
      %v436 = vadd.f32 %v359, %v404
      %v437 = vadd.f32 %v359, %v405
      %v438 = vadd.f32 %v359, %v406
      %v439 = vadd.f32 %v359, %v407
      %v440 = vadd.f32 %v359, %v408
      %v441 = vadd.f32 %v359, %v409
      %v442 = vadd.f32 %v359, %v410
      %v443 = vadd.f32 %v359, %v411
      %v444 = vadd.f32 %v359, %v412
      %v445 = vadd.f32 %v359, %v413
      %v446 = vadd.f32 %v359, %v414
      %v447 = vadd.f32 %v359, %v415
      %v448 = vadd.f32 %v359, %v416
      %v449 = vadd.f32 %v359, %v417
      %v450 = vadd.f32 %v359, %v418
      %v451 = vadd.f32 %v359, %v419
      %v452 = vadd.f32 %v359, %v420
      %v453 = vadd.f32 %v359, %v421
      %v454 = vadd.f32 %v359, %v422
      %v455 = vadd.f32 %v359, %v423
      %v456 = vadd.f32 %v359, %v424
      %v457 = vadd.f32 %v359, %v425
      %v458 = vadd.f32 %v359, %v426
      %v459 = vadd.f32 %v359, %v427
      %v460 = vadd.f32 %v359, %v428
      %v461 = vadd.f32 %v359, %v429
      %v462 = vld [vmem:[%s213 + $0x1] sm:$0x1]
      %v463 = vld [vmem:[#allocation2 + $0x1] sm:$0xff]
      %v464 = vld [vmem:[#allocation2 + $0x9] sm:$0xff]
      %v465 = vld [vmem:[#allocation2 + $0x19] sm:$0xff]
      %v466 = vld [vmem:[#allocation2 + $0x21] sm:$0xff]
      %v467 = vld [vmem:[#allocation2 + $0x31] sm:$0xff]
      %v468 = vld [vmem:[#allocation2 + $0x39] sm:$0xff]
      %v469 = vld [vmem:[#allocation2 + $0x49] sm:$0xff]
      %v470 = vld [vmem:[#allocation2 + $0x51] sm:$0xff]
      %v471 = vld [vmem:[#allocation2 + $0x61] sm:$0xff]
      %v472 = vld [vmem:[#allocation2 + $0x69] sm:$0xff]
      %v473 = vld [vmem:[#allocation2 + $0x79] sm:$0xff]
      %v474 = vld [vmem:[#allocation2 + $0x81] sm:$0xff]
      %v475 = vld [vmem:[#allocation2 + $0x91] sm:$0xff]
      %v476 = vld [vmem:[#allocation2 + $0x99] sm:$0xff]
      %v477 = vld [vmem:[#allocation2 + $0xa9] sm:$0xff]
      %v478 = vld [vmem:[#allocation2 + $0xb1] sm:$0xff]
      %v479 = vld [vmem:[#allocation2 + $0xc1] sm:$0xff]
      %v480 = vld [vmem:[#allocation2 + $0xc9] sm:$0xff]
      %v481 = vld [vmem:[#allocation2 + $0xd9] sm:$0xff]
      %v482 = vld [vmem:[#allocation2 + $0xe1] sm:$0xff]
      %v483 = vld [vmem:[#allocation2 + $0xf1] sm:$0xff]
      %v484 = vld [vmem:[#allocation2 + $0xf9] sm:$0xff]
      %v485 = vld [vmem:[#allocation2 + $0x109] sm:$0xff]
      %v486 = vld [vmem:[#allocation2 + $0x111] sm:$0xff]
      %v487 = vld [vmem:[#allocation2 + $0x121] sm:$0xff]
      %v488 = vld [vmem:[#allocation2 + $0x129] sm:$0xff]
      %v489 = vld [vmem:[#allocation2 + $0x139] sm:$0xff]
      %v490 = vld [vmem:[#allocation2 + $0x141] sm:$0xff]
      %v491 = vld [vmem:[#allocation2 + $0x151] sm:$0xff]
      %v492 = vld [vmem:[#allocation2 + $0x159] sm:$0xff]
      %v493 = vld [vmem:[#allocation2 + $0x169] sm:$0xff]
      %v494 = vld [vmem:[#allocation2 + $0x171] sm:$0xff]
      %v495 = vlaneseq
      %v496 = vshrl.u32 %v495, 7
      %v497 = vsub.s32 0, %v496
      %v498 = vrot.slane %v462, %v497
      %v499 = vmul.f32 %v463, %v498
      %v500 = vmul.f32 %v464, %v498
      %v501 = vmul.f32 %v465, %v498
      %v502 = vmul.f32 %v466, %v498
      %v503 = vmul.f32 %v467, %v498
      %v504 = vmul.f32 %v468, %v498
      %v505 = vmul.f32 %v469, %v498
      %v506 = vmul.f32 %v470, %v498
      %v507 = vmul.f32 %v471, %v498
      %v508 = vmul.f32 %v472, %v498
      %v509 = vmul.f32 %v473, %v498
      %v510 = vmul.f32 %v474, %v498
      %v511 = vmul.f32 %v475, %v498
      %v512 = vmul.f32 %v476, %v498
      %v513 = vmul.f32 %v477, %v498
      %v514 = vmul.f32 %v478, %v498
      %v515 = vmul.f32 %v479, %v498
      %v516 = vmul.f32 %v480, %v498
      %v517 = vmul.f32 %v481, %v498
      %v518 = vmul.f32 %v482, %v498
      %v519 = vmul.f32 %v483, %v498
      %v520 = vmul.f32 %v484, %v498
      %v521 = vmul.f32 %v485, %v498
      %v522 = vmul.f32 %v486, %v498
      %v523 = vmul.f32 %v487, %v498
      %v524 = vmul.f32 %v488, %v498
      %v525 = vmul.f32 %v489, %v498
      %v526 = vmul.f32 %v490, %v498
      %v527 = vmul.f32 %v491, %v498
      %v528 = vmul.f32 %v492, %v498
      %v529 = vmul.f32 %v493, %v498
      %v530 = vmul.f32 %v494, %v498
      %v531 = vadd.f32 %v430, %v499
      %v532 = vadd.f32 %v431, %v500
      %v533 = vadd.f32 %v432, %v501
      %v534 = vadd.f32 %v433, %v502
      %v535 = vadd.f32 %v434, %v503
      %v536 = vadd.f32 %v435, %v504
      %v537 = vadd.f32 %v436, %v505
      %v538 = vadd.f32 %v437, %v506
      %v539 = vadd.f32 %v438, %v507
      %v540 = vadd.f32 %v439, %v508
      %v541 = vadd.f32 %v440, %v509
      %v542 = vadd.f32 %v441, %v510
      %v543 = vadd.f32 %v442, %v511
      %v544 = vadd.f32 %v443, %v512
      %v545 = vadd.f32 %v444, %v513
      %v546 = vadd.f32 %v445, %v514
      %v547 = vadd.f32 %v446, %v515
      %v548 = vadd.f32 %v447, %v516
      %v549 = vadd.f32 %v448, %v517
      %v550 = vadd.f32 %v449, %v518
      %v551 = vadd.f32 %v450, %v519
      %v552 = vadd.f32 %v451, %v520
      %v553 = vadd.f32 %v452, %v521
      %v554 = vadd.f32 %v453, %v522
      %v555 = vadd.f32 %v454, %v523
      %v556 = vadd.f32 %v455, %v524
      %v557 = vadd.f32 %v456, %v525
      %v558 = vadd.f32 %v457, %v526
      %v559 = vadd.f32 %v458, %v527
      %v560 = vadd.f32 %v459, %v528
      %v561 = vadd.f32 %v460, %v529
      %v562 = vadd.f32 %v461, %v530
      %v563 = vld [vmem:[%s213 + $0x2] sm:$0x1]
      %v564 = vld [vmem:[#allocation2 + $0x2] sm:$0xff]
      %v565 = vld [vmem:[#allocation2 + $0xa] sm:$0xff]
      %v566 = vld [vmem:[#allocation2 + $0x1a] sm:$0xff]
      %v567 = vld [vmem:[#allocation2 + $0x22] sm:$0xff]
      %v568 = vld [vmem:[#allocation2 + $0x32] sm:$0xff]
      %v569 = vld [vmem:[#allocation2 + $0x3a] sm:$0xff]
      %v570 = vld [vmem:[#allocation2 + $0x4a] sm:$0xff]
      %v571 = vld [vmem:[#allocation2 + $0x52] sm:$0xff]
      %v572 = vld [vmem:[#allocation2 + $0x62] sm:$0xff]
      %v573 = vld [vmem:[#allocation2 + $0x6a] sm:$0xff]
      %v574 = vld [vmem:[#allocation2 + $0x7a] sm:$0xff]
      %v575 = vld [vmem:[#allocation2 + $0x82] sm:$0xff]
      %v576 = vld [vmem:[#allocation2 + $0x92] sm:$0xff]
      %v577 = vld [vmem:[#allocation2 + $0x9a] sm:$0xff]
      %v578 = vld [vmem:[#allocation2 + $0xaa] sm:$0xff]
      %v579 = vld [vmem:[#allocation2 + $0xb2] sm:$0xff]
      %v580 = vld [vmem:[#allocation2 + $0xc2] sm:$0xff]
      %v581 = vld [vmem:[#allocation2 + $0xca] sm:$0xff]
      %v582 = vld [vmem:[#allocation2 + $0xda] sm:$0xff]
      %v583 = vld [vmem:[#allocation2 + $0xe2] sm:$0xff]
      %v584 = vld [vmem:[#allocation2 + $0xf2] sm:$0xff]
      %v585 = vld [vmem:[#allocation2 + $0xfa] sm:$0xff]
      %v586 = vld [vmem:[#allocation2 + $0x10a] sm:$0xff]
      %v587 = vld [vmem:[#allocation2 + $0x112] sm:$0xff]
      %v588 = vld [vmem:[#allocation2 + $0x122] sm:$0xff]
      %v589 = vld [vmem:[#allocation2 + $0x12a] sm:$0xff]
      %v590 = vld [vmem:[#allocation2 + $0x13a] sm:$0xff]
      %v591 = vld [vmem:[#allocation2 + $0x142] sm:$0xff]
      %v592 = vld [vmem:[#allocation2 + $0x152] sm:$0xff]
      %v593 = vld [vmem:[#allocation2 + $0x15a] sm:$0xff]
      %v594 = vld [vmem:[#allocation2 + $0x16a] sm:$0xff]
      %v595 = vld [vmem:[#allocation2 + $0x172] sm:$0xff]
      %v596 = vlaneseq
      %v597 = vshrl.u32 %v596, 7
      %v598 = vsub.s32 0, %v597
      %v599 = vrot.slane %v563, %v598
      %v600 = vmul.f32 %v564, %v599
      %v601 = vmul.f32 %v565, %v599
      %v602 = vmul.f32 %v566, %v599
      %v603 = vmul.f32 %v567, %v599
      %v604 = vmul.f32 %v568, %v599
      %v605 = vmul.f32 %v569, %v599
      %v606 = vmul.f32 %v570, %v599
      %v607 = vmul.f32 %v571, %v599
      %v608 = vmul.f32 %v572, %v599
      %v609 = vmul.f32 %v573, %v599
      %v610 = vmul.f32 %v574, %v599
      %v611 = vmul.f32 %v575, %v599
      %v612 = vmul.f32 %v576, %v599
      %v613 = vmul.f32 %v577, %v599
      %v614 = vmul.f32 %v578, %v599
      %v615 = vmul.f32 %v579, %v599
      %v616 = vmul.f32 %v580, %v599
      %v617 = vmul.f32 %v581, %v599
      %v618 = vmul.f32 %v582, %v599
      %v619 = vmul.f32 %v583, %v599
      %v620 = vmul.f32 %v584, %v599
      %v621 = vmul.f32 %v585, %v599
      %v622 = vmul.f32 %v586, %v599
      %v623 = vmul.f32 %v587, %v599
      %v624 = vmul.f32 %v588, %v599
      %v625 = vmul.f32 %v589, %v599
      %v626 = vmul.f32 %v590, %v599
      %v627 = vmul.f32 %v591, %v599
      %v628 = vmul.f32 %v592, %v599
      %v629 = vmul.f32 %v593, %v599
      %v630 = vmul.f32 %v594, %v599
      %v631 = vmul.f32 %v595, %v599
      %v632 = vadd.f32 %v531, %v600
      %v633 = vadd.f32 %v532, %v601
      %v634 = vadd.f32 %v533, %v602
      %v635 = vadd.f32 %v534, %v603
      %v636 = vadd.f32 %v535, %v604
      %v637 = vadd.f32 %v536, %v605
      %v638 = vadd.f32 %v537, %v606
      %v639 = vadd.f32 %v538, %v607
      %v640 = vadd.f32 %v539, %v608
      %v641 = vadd.f32 %v540, %v609
      %v642 = vadd.f32 %v541, %v610
      %v643 = vadd.f32 %v542, %v611
      %v644 = vadd.f32 %v543, %v612
      %v645 = vadd.f32 %v544, %v613
      %v646 = vadd.f32 %v545, %v614
      %v647 = vadd.f32 %v546, %v615
      %v648 = vadd.f32 %v547, %v616
      %v649 = vadd.f32 %v548, %v617
      %v650 = vadd.f32 %v549, %v618
      %v651 = vadd.f32 %v550, %v619
      %v652 = vadd.f32 %v551, %v620
      %v653 = vadd.f32 %v552, %v621
      %v654 = vadd.f32 %v553, %v622
      %v655 = vadd.f32 %v554, %v623
      %v656 = vadd.f32 %v555, %v624
      %v657 = vadd.f32 %v556, %v625
      %v658 = vadd.f32 %v557, %v626
      %v659 = vadd.f32 %v558, %v627
      %v660 = vadd.f32 %v559, %v628
      %v661 = vadd.f32 %v560, %v629
      %v662 = vadd.f32 %v561, %v630
      %v663 = vadd.f32 %v562, %v631
      %v664 = vld [vmem:[%s213 + $0x3] sm:$0x1]
      %v665 = vld [vmem:[%s321] sm:$0xff]
      %v666 = vld [vmem:[%s321 + $0x8] sm:$0xff]
      %v667 = vld [vmem:[%s321 + $0x18] sm:$0xff]
      %v668 = vld [vmem:[%s321 + $0x20] sm:$0xff]
      %v669 = vld [vmem:[%s321 + $0x30] sm:$0xff]
      %v670 = vld [vmem:[%s321 + $0x38] sm:$0xff]
      %v671 = vld [vmem:[%s321 + $0x48] sm:$0xff]
      %v672 = vld [vmem:[%s321 + $0x50] sm:$0xff]
      %v673 = vld [vmem:[%s321 + $0x60] sm:$0xff]
      %v674 = vld [vmem:[%s321 + $0x68] sm:$0xff]
      %v675 = vld [vmem:[%s321 + $0x78] sm:$0xff]
      %v676 = vld [vmem:[%s321 + $0x80] sm:$0xff]
      %v677 = vld [vmem:[%s321 + $0x90] sm:$0xff]
      %v678 = vld [vmem:[%s321 + $0x98] sm:$0xff]
      %v679 = vld [vmem:[%s321 + $0xa8] sm:$0xff]
      %v680 = vld [vmem:[%s321 + $0xb0] sm:$0xff]
      %v681 = vld [vmem:[%s321 + $0xc0] sm:$0xff]
      %v682 = vld [vmem:[%s321 + $0xc8] sm:$0xff]
      %v683 = vld [vmem:[%s321 + $0xd8] sm:$0xff]
      %v684 = vld [vmem:[%s321 + $0xe0] sm:$0xff]
      %v685 = vld [vmem:[%s321 + $0xf0] sm:$0xff]
      %v686 = vld [vmem:[%s321 + $0xf8] sm:$0xff]
      %v687 = vld [vmem:[%s321 + $0x108] sm:$0xff]
      %v688 = vld [vmem:[%s321 + $0x110] sm:$0xff]
      %v689 = vld [vmem:[%s321 + $0x120] sm:$0xff]
      %v690 = vld [vmem:[%s321 + $0x128] sm:$0xff]
      %v691 = vld [vmem:[%s321 + $0x138] sm:$0xff]
      %v692 = vld [vmem:[%s321 + $0x140] sm:$0xff]
      %v693 = vld [vmem:[%s321 + $0x150] sm:$0xff]
      %v694 = vld [vmem:[%s321 + $0x158] sm:$0xff]
      %v695 = vld [vmem:[%s321 + $0x168] sm:$0xff]
      %v696 = vld [vmem:[%s321 + $0x170] sm:$0xff]
      %v697 = vlaneseq
      %v698 = vshrl.u32 %v697, 7
      %v699 = vsub.s32 0, %v698
      %v700 = vrot.slane %v664, %v699
      %v701 = vmul.f32 %v665, %v700
      %v702 = vmul.f32 %v666, %v700
      %v703 = vmul.f32 %v667, %v700
      %v704 = vmul.f32 %v668, %v700
      %v705 = vmul.f32 %v669, %v700
      %v706 = vmul.f32 %v670, %v700
      %v707 = vmul.f32 %v671, %v700
      %v708 = vmul.f32 %v672, %v700
      %v709 = vmul.f32 %v673, %v700
      %v710 = vmul.f32 %v674, %v700
      %v711 = vmul.f32 %v675, %v700
      %v712 = vmul.f32 %v676, %v700
      %v713 = vmul.f32 %v677, %v700
      %v714 = vmul.f32 %v678, %v700
      %v715 = vmul.f32 %v679, %v700
      %v716 = vmul.f32 %v680, %v700
      %v717 = vmul.f32 %v681, %v700
      %v718 = vmul.f32 %v682, %v700
      %v719 = vmul.f32 %v683, %v700
      %v720 = vmul.f32 %v684, %v700
      %v721 = vmul.f32 %v685, %v700
      %v722 = vmul.f32 %v686, %v700
      %v723 = vmul.f32 %v687, %v700
      %v724 = vmul.f32 %v688, %v700
      %v725 = vmul.f32 %v689, %v700
      %v726 = vmul.f32 %v690, %v700
      %v727 = vmul.f32 %v691, %v700
      %v728 = vmul.f32 %v692, %v700
      %v729 = vmul.f32 %v693, %v700
      %v730 = vmul.f32 %v694, %v700
      %v731 = vmul.f32 %v695, %v700
      %v732 = vmul.f32 %v696, %v700
      %v733 = vadd.f32 %v632, %v701
      %v734 = vadd.f32 %v633, %v702
      %v735 = vadd.f32 %v634, %v703
      %v736 = vadd.f32 %v635, %v704
      %v737 = vadd.f32 %v636, %v705
      %v738 = vadd.f32 %v637, %v706
      %v739 = vadd.f32 %v638, %v707
      %v740 = vadd.f32 %v639, %v708
      %v741 = vadd.f32 %v640, %v709
      %v742 = vadd.f32 %v641, %v710
      %v743 = vadd.f32 %v642, %v711
      %v744 = vadd.f32 %v643, %v712
      %v745 = vadd.f32 %v644, %v713
      %v746 = vadd.f32 %v645, %v714
      %v747 = vadd.f32 %v646, %v715
      %v748 = vadd.f32 %v647, %v716
      %v749 = vadd.f32 %v648, %v717
      %v750 = vadd.f32 %v649, %v718
      %v751 = vadd.f32 %v650, %v719
      %v752 = vadd.f32 %v651, %v720
      %v753 = vadd.f32 %v652, %v721
      %v754 = vadd.f32 %v653, %v722
      %v755 = vadd.f32 %v654, %v723
      %v756 = vadd.f32 %v655, %v724
      %v757 = vadd.f32 %v656, %v725
      %v758 = vadd.f32 %v657, %v726
      %v759 = vadd.f32 %v658, %v727
      %v760 = vadd.f32 %v659, %v728
      %v761 = vadd.f32 %v660, %v729
      %v762 = vadd.f32 %v661, %v730
      %v763 = vadd.f32 %v662, %v731
      %v764 = vadd.f32 %v663, %v732
      %v765 = vld [vmem:[%s213 + $0x4] sm:$0x1]
      %v766 = vld [vmem:[%s321 + $0x1] sm:$0xff]
      %v767 = vld [vmem:[%s321 + $0x9] sm:$0xff]
      %v768 = vld [vmem:[%s321 + $0x19] sm:$0xff]
      %v769 = vld [vmem:[%s321 + $0x21] sm:$0xff]
      %v770 = vld [vmem:[%s321 + $0x31] sm:$0xff]
      %v771 = vld [vmem:[%s321 + $0x39] sm:$0xff]
      %v772 = vld [vmem:[%s321 + $0x49] sm:$0xff]
      %v773 = vld [vmem:[%s321 + $0x51] sm:$0xff]
      %v774 = vld [vmem:[%s321 + $0x61] sm:$0xff]
      %v775 = vld [vmem:[%s321 + $0x69] sm:$0xff]
      %v776 = vld [vmem:[%s321 + $0x79] sm:$0xff]
      %v777 = vld [vmem:[%s321 + $0x81] sm:$0xff]
      %v778 = vld [vmem:[%s321 + $0x91] sm:$0xff]
      %v779 = vld [vmem:[%s321 + $0x99] sm:$0xff]
      %v780 = vld [vmem:[%s321 + $0xa9] sm:$0xff]
      %v781 = vld [vmem:[%s321 + $0xb1] sm:$0xff]
      %v782 = vld [vmem:[%s321 + $0xc1] sm:$0xff]
      %v783 = vld [vmem:[%s321 + $0xc9] sm:$0xff]
      %v784 = vld [vmem:[%s321 + $0xd9] sm:$0xff]
      %v785 = vld [vmem:[%s321 + $0xe1] sm:$0xff]
      %v786 = vld [vmem:[%s321 + $0xf1] sm:$0xff]
      %v787 = vld [vmem:[%s321 + $0xf9] sm:$0xff]
      %v788 = vld [vmem:[%s321 + $0x109] sm:$0xff]
      %v789 = vld [vmem:[%s321 + $0x111] sm:$0xff]
      %v790 = vld [vmem:[%s321 + $0x121] sm:$0xff]
      %v791 = vld [vmem:[%s321 + $0x129] sm:$0xff]
      %v792 = vld [vmem:[%s321 + $0x139] sm:$0xff]
      %v793 = vld [vmem:[%s321 + $0x141] sm:$0xff]
      %v794 = vld [vmem:[%s321 + $0x151] sm:$0xff]
      %v795 = vld [vmem:[%s321 + $0x159] sm:$0xff]
      %v796 = vld [vmem:[%s321 + $0x169] sm:$0xff]
      %v797 = vld [vmem:[%s321 + $0x171] sm:$0xff]
      %v798 = vlaneseq
      %v799 = vshrl.u32 %v798, 7
      %v800 = vsub.s32 0, %v799
      %v801 = vrot.slane %v765, %v800
      %v802 = vmul.f32 %v766, %v801
      %v803 = vmul.f32 %v767, %v801
      %v804 = vmul.f32 %v768, %v801
      %v805 = vmul.f32 %v769, %v801
      %v806 = vmul.f32 %v770, %v801
      %v807 = vmul.f32 %v771, %v801
      %v808 = vmul.f32 %v772, %v801
      %v809 = vmul.f32 %v773, %v801
      %v810 = vmul.f32 %v774, %v801
      %v811 = vmul.f32 %v775, %v801
      %v812 = vmul.f32 %v776, %v801
      %v813 = vmul.f32 %v777, %v801
      %v814 = vmul.f32 %v778, %v801
      %v815 = vmul.f32 %v779, %v801
      %v816 = vmul.f32 %v780, %v801
      %v817 = vmul.f32 %v781, %v801
      %v818 = vmul.f32 %v782, %v801
      %v819 = vmul.f32 %v783, %v801
      %v820 = vmul.f32 %v784, %v801
      %v821 = vmul.f32 %v785, %v801
      %v822 = vmul.f32 %v786, %v801
      %v823 = vmul.f32 %v787, %v801
      %v824 = vmul.f32 %v788, %v801
      %v825 = vmul.f32 %v789, %v801
      %v826 = vmul.f32 %v790, %v801
      %v827 = vmul.f32 %v791, %v801
      %v828 = vmul.f32 %v792, %v801
      %v829 = vmul.f32 %v793, %v801
      %v830 = vmul.f32 %v794, %v801
      %v831 = vmul.f32 %v795, %v801
      %v832 = vmul.f32 %v796, %v801
      %v833 = vmul.f32 %v797, %v801
      %v834 = vadd.f32 %v733, %v802
      %v835 = vadd.f32 %v734, %v803
      %v836 = vadd.f32 %v735, %v804
      %v837 = vadd.f32 %v736, %v805
      %v838 = vadd.f32 %v737, %v806
      %v839 = vadd.f32 %v738, %v807
      %v840 = vadd.f32 %v739, %v808
      %v841 = vadd.f32 %v740, %v809
      %v842 = vadd.f32 %v741, %v810
      %v843 = vadd.f32 %v742, %v811
      %v844 = vadd.f32 %v743, %v812
      %v845 = vadd.f32 %v744, %v813
      %v846 = vadd.f32 %v745, %v814
      %v847 = vadd.f32 %v746, %v815
      %v848 = vadd.f32 %v747, %v816
      %v849 = vadd.f32 %v748, %v817
      %v850 = vadd.f32 %v749, %v818
      %v851 = vadd.f32 %v750, %v819
      %v852 = vadd.f32 %v751, %v820
      %v853 = vadd.f32 %v752, %v821
      %v854 = vadd.f32 %v753, %v822
      %v855 = vadd.f32 %v754, %v823
      %v856 = vadd.f32 %v755, %v824
      %v857 = vadd.f32 %v756, %v825
      %v858 = vadd.f32 %v757, %v826
      %v859 = vadd.f32 %v758, %v827
      %v860 = vadd.f32 %v759, %v828
      %v861 = vadd.f32 %v760, %v829
      %v862 = vadd.f32 %v761, %v830
      %v863 = vadd.f32 %v762, %v831
      %v864 = vadd.f32 %v763, %v832
      %v865 = vadd.f32 %v764, %v833
      %v866 = vld [vmem:[%s213 + $0x5] sm:$0x1]
      %v867 = vld [vmem:[%s321 + $0x2] sm:$0xff]
      %v868 = vld [vmem:[%s321 + $0xa] sm:$0xff]
      %v869 = vld [vmem:[%s321 + $0x1a] sm:$0xff]
      %v870 = vld [vmem:[%s321 + $0x22] sm:$0xff]
      %v871 = vld [vmem:[%s321 + $0x32] sm:$0xff]
      %v872 = vld [vmem:[%s321 + $0x3a] sm:$0xff]
      %v873 = vld [vmem:[%s321 + $0x4a] sm:$0xff]
      %v874 = vld [vmem:[%s321 + $0x52] sm:$0xff]
      %v875 = vld [vmem:[%s321 + $0x62] sm:$0xff]
      %v876 = vld [vmem:[%s321 + $0x6a] sm:$0xff]
      %v877 = vld [vmem:[%s321 + $0x7a] sm:$0xff]
      %v878 = vld [vmem:[%s321 + $0x82] sm:$0xff]
      %v879 = vld [vmem:[%s321 + $0x92] sm:$0xff]
      %v880 = vld [vmem:[%s321 + $0x9a] sm:$0xff]
      %v881 = vld [vmem:[%s321 + $0xaa] sm:$0xff]
      %v882 = vld [vmem:[%s321 + $0xb2] sm:$0xff]
      %v883 = vld [vmem:[%s321 + $0xc2] sm:$0xff]
      %v884 = vld [vmem:[%s321 + $0xca] sm:$0xff]
      %v885 = vld [vmem:[%s321 + $0xda] sm:$0xff]
      %v886 = vld [vmem:[%s321 + $0xe2] sm:$0xff]
      %v887 = vld [vmem:[%s321 + $0xf2] sm:$0xff]
      %v888 = vld [vmem:[%s321 + $0xfa] sm:$0xff]
      %v889 = vld [vmem:[%s321 + $0x10a] sm:$0xff]
      %v890 = vld [vmem:[%s321 + $0x112] sm:$0xff]
      %v891 = vld [vmem:[%s321 + $0x122] sm:$0xff]
      %v892 = vld [vmem:[%s321 + $0x12a] sm:$0xff]
      %v893 = vld [vmem:[%s321 + $0x13a] sm:$0xff]
      %v894 = vld [vmem:[%s321 + $0x142] sm:$0xff]
      %v895 = vld [vmem:[%s321 + $0x152] sm:$0xff]
      %v896 = vld [vmem:[%s321 + $0x15a] sm:$0xff]
      %v897 = vld [vmem:[%s321 + $0x16a] sm:$0xff]
      %v898 = vld [vmem:[%s321 + $0x172] sm:$0xff]
      %v899 = vlaneseq
      %v900 = vshrl.u32 %v899, 7
      %v901 = vsub.s32 0, %v900
      %v902 = vrot.slane %v866, %v901
      %v903 = vmul.f32 %v867, %v902
      %v904 = vmul.f32 %v868, %v902
      %v905 = vmul.f32 %v869, %v902
      %v906 = vmul.f32 %v870, %v902
      %v907 = vmul.f32 %v871, %v902
      %v908 = vmul.f32 %v872, %v902
      %v909 = vmul.f32 %v873, %v902
      %v910 = vmul.f32 %v874, %v902
      %v911 = vmul.f32 %v875, %v902
      %v912 = vmul.f32 %v876, %v902
      %v913 = vmul.f32 %v877, %v902
      %v914 = vmul.f32 %v878, %v902
      %v915 = vmul.f32 %v879, %v902
      %v916 = vmul.f32 %v880, %v902
      %v917 = vmul.f32 %v881, %v902
      %v918 = vmul.f32 %v882, %v902
      %v919 = vmul.f32 %v883, %v902
      %v920 = vmul.f32 %v884, %v902
      %v921 = vmul.f32 %v885, %v902
      %v922 = vmul.f32 %v886, %v902
      %v923 = vmul.f32 %v887, %v902
      %v924 = vmul.f32 %v888, %v902
      %v925 = vmul.f32 %v889, %v902
      %v926 = vmul.f32 %v890, %v902
      %v927 = vmul.f32 %v891, %v902
      %v928 = vmul.f32 %v892, %v902
      %v929 = vmul.f32 %v893, %v902
      %v930 = vmul.f32 %v894, %v902
      %v931 = vmul.f32 %v895, %v902
      %v932 = vmul.f32 %v896, %v902
      %v933 = vmul.f32 %v897, %v902
      %v934 = vmul.f32 %v898, %v902
      %v935 = vadd.f32 %v834, %v903
      %v936 = vadd.f32 %v835, %v904
      %v937 = vadd.f32 %v836, %v905
      %v938 = vadd.f32 %v837, %v906
      %v939 = vadd.f32 %v838, %v907
      %v940 = vadd.f32 %v839, %v908
      %v941 = vadd.f32 %v840, %v909
      %v942 = vadd.f32 %v841, %v910
      %v943 = vadd.f32 %v842, %v911
      %v944 = vadd.f32 %v843, %v912
      %v945 = vadd.f32 %v844, %v913
      %v946 = vadd.f32 %v845, %v914
      %v947 = vadd.f32 %v846, %v915
      %v948 = vadd.f32 %v847, %v916
      %v949 = vadd.f32 %v848, %v917
      %v950 = vadd.f32 %v849, %v918
      %v951 = vadd.f32 %v850, %v919
      %v952 = vadd.f32 %v851, %v920
      %v953 = vadd.f32 %v852, %v921
      %v954 = vadd.f32 %v853, %v922
      %v955 = vadd.f32 %v854, %v923
      %v956 = vadd.f32 %v855, %v924
      %v957 = vadd.f32 %v856, %v925
      %v958 = vadd.f32 %v857, %v926
      %v959 = vadd.f32 %v858, %v927
      %v960 = vadd.f32 %v859, %v928
      %v961 = vadd.f32 %v860, %v929
      %v962 = vadd.f32 %v861, %v930
      %v963 = vadd.f32 %v862, %v931
      %v964 = vadd.f32 %v863, %v932
      %v965 = vadd.f32 %v864, %v933
      %v966 = vadd.f32 %v865, %v934
      %v967 = vld [vmem:[%s213 + $0x6] sm:$0x1]
      %s968 = scalar_lea.vmem [#allocation2], 48
      %v969 = vld [vmem:[%s968] sm:$0xff]
      %v970 = vld [vmem:[%s968 + $0x8] sm:$0xff]
      %v971 = vld [vmem:[%s968 + $0x18] sm:$0xff]
      %v972 = vld [vmem:[%s968 + $0x20] sm:$0xff]
      %v973 = vld [vmem:[%s968 + $0x30] sm:$0xff]
      %v974 = vld [vmem:[%s968 + $0x38] sm:$0xff]
      %v975 = vld [vmem:[%s968 + $0x48] sm:$0xff]
      %v976 = vld [vmem:[%s968 + $0x50] sm:$0xff]
      %v977 = vld [vmem:[%s968 + $0x60] sm:$0xff]
      %v978 = vld [vmem:[%s968 + $0x68] sm:$0xff]
      %v979 = vld [vmem:[%s968 + $0x78] sm:$0xff]
      %v980 = vld [vmem:[%s968 + $0x80] sm:$0xff]
      %v981 = vld [vmem:[%s968 + $0x90] sm:$0xff]
      %v982 = vld [vmem:[%s968 + $0x98] sm:$0xff]
      %v983 = vld [vmem:[%s968 + $0xa8] sm:$0xff]
      %v984 = vld [vmem:[%s968 + $0xb0] sm:$0xff]
      %v985 = vld [vmem:[%s968 + $0xc0] sm:$0xff]
      %v986 = vld [vmem:[%s968 + $0xc8] sm:$0xff]
      %v987 = vld [vmem:[%s968 + $0xd8] sm:$0xff]
      %v988 = vld [vmem:[%s968 + $0xe0] sm:$0xff]
      %v989 = vld [vmem:[%s968 + $0xf0] sm:$0xff]
      %v990 = vld [vmem:[%s968 + $0xf8] sm:$0xff]
      %v991 = vld [vmem:[%s968 + $0x108] sm:$0xff]
      %v992 = vld [vmem:[%s968 + $0x110] sm:$0xff]
      %v993 = vld [vmem:[%s968 + $0x120] sm:$0xff]
      %v994 = vld [vmem:[%s968 + $0x128] sm:$0xff]
      %v995 = vld [vmem:[%s968 + $0x138] sm:$0xff]
      %v996 = vld [vmem:[%s968 + $0x140] sm:$0xff]
      %v997 = vld [vmem:[%s968 + $0x150] sm:$0xff]
      %v998 = vld [vmem:[%s968 + $0x158] sm:$0xff]
      %v999 = vld [vmem:[%s968 + $0x168] sm:$0xff]
      %v1000 = vld [vmem:[%s968 + $0x170] sm:$0xff]
      %v1001 = vlaneseq
      %v1002 = vshrl.u32 %v1001, 7
      %v1003 = vsub.s32 0, %v1002
      %v1004 = vrot.slane %v967, %v1003
      %v1005 = vmul.f32 %v969, %v1004
      %v1006 = vmul.f32 %v970, %v1004
      %v1007 = vmul.f32 %v971, %v1004
      %v1008 = vmul.f32 %v972, %v1004
      %v1009 = vmul.f32 %v973, %v1004
      %v1010 = vmul.f32 %v974, %v1004
      %v1011 = vmul.f32 %v975, %v1004
      %v1012 = vmul.f32 %v976, %v1004
      %v1013 = vmul.f32 %v977, %v1004
      %v1014 = vmul.f32 %v978, %v1004
      %v1015 = vmul.f32 %v979, %v1004
      %v1016 = vmul.f32 %v980, %v1004
      %v1017 = vmul.f32 %v981, %v1004
      %v1018 = vmul.f32 %v982, %v1004
      %v1019 = vmul.f32 %v983, %v1004
      %v1020 = vmul.f32 %v984, %v1004
      %v1021 = vmul.f32 %v985, %v1004
      %v1022 = vmul.f32 %v986, %v1004
      %v1023 = vmul.f32 %v987, %v1004
      %v1024 = vmul.f32 %v988, %v1004
      %v1025 = vmul.f32 %v989, %v1004
      %v1026 = vmul.f32 %v990, %v1004
      %v1027 = vmul.f32 %v991, %v1004
      %v1028 = vmul.f32 %v992, %v1004
      %v1029 = vmul.f32 %v993, %v1004
      %v1030 = vmul.f32 %v994, %v1004
      %v1031 = vmul.f32 %v995, %v1004
      %v1032 = vmul.f32 %v996, %v1004
      %v1033 = vmul.f32 %v997, %v1004
      %v1034 = vmul.f32 %v998, %v1004
      %v1035 = vmul.f32 %v999, %v1004
      %v1036 = vmul.f32 %v1000, %v1004
      %v1037 = vadd.f32 %v935, %v1005
      %v1038 = vadd.f32 %v936, %v1006
      %v1039 = vadd.f32 %v937, %v1007
      %v1040 = vadd.f32 %v938, %v1008
      %v1041 = vadd.f32 %v939, %v1009
      %v1042 = vadd.f32 %v940, %v1010
      %v1043 = vadd.f32 %v941, %v1011
      %v1044 = vadd.f32 %v942, %v1012
      %v1045 = vadd.f32 %v943, %v1013
      %v1046 = vadd.f32 %v944, %v1014
      %v1047 = vadd.f32 %v945, %v1015
      %v1048 = vadd.f32 %v946, %v1016
      %v1049 = vadd.f32 %v947, %v1017
      %v1050 = vadd.f32 %v948, %v1018
      %v1051 = vadd.f32 %v949, %v1019
      %v1052 = vadd.f32 %v950, %v1020
      %v1053 = vadd.f32 %v951, %v1021
      %v1054 = vadd.f32 %v952, %v1022
      %v1055 = vadd.f32 %v953, %v1023
      %v1056 = vadd.f32 %v954, %v1024
      %v1057 = vadd.f32 %v955, %v1025
      %v1058 = vadd.f32 %v956, %v1026
      %v1059 = vadd.f32 %v957, %v1027
      %v1060 = vadd.f32 %v958, %v1028
      %v1061 = vadd.f32 %v959, %v1029
      %v1062 = vadd.f32 %v960, %v1030
      %v1063 = vadd.f32 %v961, %v1031
      %v1064 = vadd.f32 %v962, %v1032
      %v1065 = vadd.f32 %v963, %v1033
      %v1066 = vadd.f32 %v964, %v1034
      %v1067 = vadd.f32 %v965, %v1035
      %v1068 = vadd.f32 %v966, %v1036
      %v1069 = vld [vmem:[%s213 + $0x7] sm:$0x1]
      %v1070 = vld [vmem:[%s968 + $0x1] sm:$0xff]
      %v1071 = vld [vmem:[%s968 + $0x9] sm:$0xff]
      %v1072 = vld [vmem:[%s968 + $0x19] sm:$0xff]
      %v1073 = vld [vmem:[%s968 + $0x21] sm:$0xff]
      %v1074 = vld [vmem:[%s968 + $0x31] sm:$0xff]
      %v1075 = vld [vmem:[%s968 + $0x39] sm:$0xff]
      %v1076 = vld [vmem:[%s968 + $0x49] sm:$0xff]
      %v1077 = vld [vmem:[%s968 + $0x51] sm:$0xff]
      %v1078 = vld [vmem:[%s968 + $0x61] sm:$0xff]
      %v1079 = vld [vmem:[%s968 + $0x69] sm:$0xff]
      %v1080 = vld [vmem:[%s968 + $0x79] sm:$0xff]
      %v1081 = vld [vmem:[%s968 + $0x81] sm:$0xff]
      %v1082 = vld [vmem:[%s968 + $0x91] sm:$0xff]
      %v1083 = vld [vmem:[%s968 + $0x99] sm:$0xff]
      %v1084 = vld [vmem:[%s968 + $0xa9] sm:$0xff]
      %v1085 = vld [vmem:[%s968 + $0xb1] sm:$0xff]
      %v1086 = vld [vmem:[%s968 + $0xc1] sm:$0xff]
      %v1087 = vld [vmem:[%s968 + $0xc9] sm:$0xff]
      %v1088 = vld [vmem:[%s968 + $0xd9] sm:$0xff]
      %v1089 = vld [vmem:[%s968 + $0xe1] sm:$0xff]
      %v1090 = vld [vmem:[%s968 + $0xf1] sm:$0xff]
      %v1091 = vld [vmem:[%s968 + $0xf9] sm:$0xff]
      %v1092 = vld [vmem:[%s968 + $0x109] sm:$0xff]
      %v1093 = vld [vmem:[%s968 + $0x111] sm:$0xff]
      %v1094 = vld [vmem:[%s968 + $0x121] sm:$0xff]
      %v1095 = vld [vmem:[%s968 + $0x129] sm:$0xff]
      %v1096 = vld [vmem:[%s968 + $0x139] sm:$0xff]
      %v1097 = vld [vmem:[%s968 + $0x141] sm:$0xff]
      %v1098 = vld [vmem:[%s968 + $0x151] sm:$0xff]
      %v1099 = vld [vmem:[%s968 + $0x159] sm:$0xff]
      %v1100 = vld [vmem:[%s968 + $0x169] sm:$0xff]
      %v1101 = vld [vmem:[%s968 + $0x171] sm:$0xff]
      %v1102 = vlaneseq
      %v1103 = vshrl.u32 %v1102, 7
      %v1104 = vsub.s32 0, %v1103
      %v1105 = vrot.slane %v1069, %v1104
      %v1106 = vmul.f32 %v1070, %v1105
      %v1107 = vmul.f32 %v1071, %v1105
      %v1108 = vmul.f32 %v1072, %v1105
      %v1109 = vmul.f32 %v1073, %v1105
      %v1110 = vmul.f32 %v1074, %v1105
      %v1111 = vmul.f32 %v1075, %v1105
      %v1112 = vmul.f32 %v1076, %v1105
      %v1113 = vmul.f32 %v1077, %v1105
      %v1114 = vmul.f32 %v1078, %v1105
      %v1115 = vmul.f32 %v1079, %v1105
      %v1116 = vmul.f32 %v1080, %v1105
      %v1117 = vmul.f32 %v1081, %v1105
      %v1118 = vmul.f32 %v1082, %v1105
      %v1119 = vmul.f32 %v1083, %v1105
      %v1120 = vmul.f32 %v1084, %v1105
      %v1121 = vmul.f32 %v1085, %v1105
      %v1122 = vmul.f32 %v1086, %v1105
      %v1123 = vmul.f32 %v1087, %v1105
      %v1124 = vmul.f32 %v1088, %v1105
      %v1125 = vmul.f32 %v1089, %v1105
      %v1126 = vmul.f32 %v1090, %v1105
      %v1127 = vmul.f32 %v1091, %v1105
      %v1128 = vmul.f32 %v1092, %v1105
      %v1129 = vmul.f32 %v1093, %v1105
      %v1130 = vmul.f32 %v1094, %v1105
      %v1131 = vmul.f32 %v1095, %v1105
      %v1132 = vmul.f32 %v1096, %v1105
      %v1133 = vmul.f32 %v1097, %v1105
      %v1134 = vmul.f32 %v1098, %v1105
      %v1135 = vmul.f32 %v1099, %v1105
      %v1136 = vmul.f32 %v1100, %v1105
      %v1137 = vmul.f32 %v1101, %v1105
      %v1138 = vadd.f32 %v1037, %v1106
      %v1139 = vadd.f32 %v1038, %v1107
      %v1140 = vadd.f32 %v1039, %v1108
      %v1141 = vadd.f32 %v1040, %v1109
      %v1142 = vadd.f32 %v1041, %v1110
      %v1143 = vadd.f32 %v1042, %v1111
      %v1144 = vadd.f32 %v1043, %v1112
      %v1145 = vadd.f32 %v1044, %v1113
      %v1146 = vadd.f32 %v1045, %v1114
      %v1147 = vadd.f32 %v1046, %v1115
      %v1148 = vadd.f32 %v1047, %v1116
      %v1149 = vadd.f32 %v1048, %v1117
      %v1150 = vadd.f32 %v1049, %v1118
      %v1151 = vadd.f32 %v1050, %v1119
      %v1152 = vadd.f32 %v1051, %v1120
      %v1153 = vadd.f32 %v1052, %v1121
      %v1154 = vadd.f32 %v1053, %v1122
      %v1155 = vadd.f32 %v1054, %v1123
      %v1156 = vadd.f32 %v1055, %v1124
      %v1157 = vadd.f32 %v1056, %v1125
      %v1158 = vadd.f32 %v1057, %v1126
      %v1159 = vadd.f32 %v1058, %v1127
      %v1160 = vadd.f32 %v1059, %v1128
      %v1161 = vadd.f32 %v1060, %v1129
      %v1162 = vadd.f32 %v1061, %v1130
      %v1163 = vadd.f32 %v1062, %v1131
      %v1164 = vadd.f32 %v1063, %v1132
      %v1165 = vadd.f32 %v1064, %v1133
      %v1166 = vadd.f32 %v1065, %v1134
      %v1167 = vadd.f32 %v1066, %v1135
      %v1168 = vadd.f32 %v1067, %v1136
      %v1169 = vadd.f32 %v1068, %v1137
      %v1170 = vld [vmem:[%s213 + $0x8] sm:$0x1]
      %v1171 = vld [vmem:[%s968 + $0x2] sm:$0xff]
      %v1172 = vld [vmem:[%s968 + $0xa] sm:$0xff]
      %v1173 = vld [vmem:[%s968 + $0x1a] sm:$0xff]
      %v1174 = vld [vmem:[%s968 + $0x22] sm:$0xff]
      %v1175 = vld [vmem:[%s968 + $0x32] sm:$0xff]
      %v1176 = vld [vmem:[%s968 + $0x3a] sm:$0xff]
      %v1177 = vld [vmem:[%s968 + $0x4a] sm:$0xff]
      %v1178 = vld [vmem:[%s968 + $0x52] sm:$0xff]
      %v1179 = vld [vmem:[%s968 + $0x62] sm:$0xff]
      %v1180 = vld [vmem:[%s968 + $0x6a] sm:$0xff]
      %v1181 = vld [vmem:[%s968 + $0x7a] sm:$0xff]
      %v1182 = vld [vmem:[%s968 + $0x82] sm:$0xff]
      %v1183 = vld [vmem:[%s968 + $0x92] sm:$0xff]
      %v1184 = vld [vmem:[%s968 + $0x9a] sm:$0xff]
      %v1185 = vld [vmem:[%s968 + $0xaa] sm:$0xff]
      %v1186 = vld [vmem:[%s968 + $0xb2] sm:$0xff]
      %v1187 = vld [vmem:[%s968 + $0xc2] sm:$0xff]
      %v1188 = vld [vmem:[%s968 + $0xca] sm:$0xff]
      %v1189 = vld [vmem:[%s968 + $0xda] sm:$0xff]
      %v1190 = vld [vmem:[%s968 + $0xe2] sm:$0xff]
      %v1191 = vld [vmem:[%s968 + $0xf2] sm:$0xff]
      %v1192 = vld [vmem:[%s968 + $0xfa] sm:$0xff]
      %v1193 = vld [vmem:[%s968 + $0x10a] sm:$0xff]
      %v1194 = vld [vmem:[%s968 + $0x112] sm:$0xff]
      %v1195 = vld [vmem:[%s968 + $0x122] sm:$0xff]
      %v1196 = vld [vmem:[%s968 + $0x12a] sm:$0xff]
      %v1197 = vld [vmem:[%s968 + $0x13a] sm:$0xff]
      %v1198 = vld [vmem:[%s968 + $0x142] sm:$0xff]
      %v1199 = vld [vmem:[%s968 + $0x152] sm:$0xff]
      %v1200 = vld [vmem:[%s968 + $0x15a] sm:$0xff]
      %v1201 = vld [vmem:[%s968 + $0x16a] sm:$0xff]
      %v1202 = vld [vmem:[%s968 + $0x172] sm:$0xff]
      %v1203 = vlaneseq
      %v1204 = vshrl.u32 %v1203, 7
      %v1205 = vsub.s32 0, %v1204
      %v1206 = vrot.slane %v1170, %v1205
      %v1207 = vmul.f32 %v1171, %v1206
      %v1208 = vmul.f32 %v1172, %v1206
      %v1209 = vmul.f32 %v1173, %v1206
      %v1210 = vmul.f32 %v1174, %v1206
      %v1211 = vmul.f32 %v1175, %v1206
      %v1212 = vmul.f32 %v1176, %v1206
      %v1213 = vmul.f32 %v1177, %v1206
      %v1214 = vmul.f32 %v1178, %v1206
      %v1215 = vmul.f32 %v1179, %v1206
      %v1216 = vmul.f32 %v1180, %v1206
      %v1217 = vmul.f32 %v1181, %v1206
      %v1218 = vmul.f32 %v1182, %v1206
      %v1219 = vmul.f32 %v1183, %v1206
      %v1220 = vmul.f32 %v1184, %v1206
      %v1221 = vmul.f32 %v1185, %v1206
      %v1222 = vmul.f32 %v1186, %v1206
      %v1223 = vmul.f32 %v1187, %v1206
      %v1224 = vmul.f32 %v1188, %v1206
      %v1225 = vmul.f32 %v1189, %v1206
      %v1226 = vmul.f32 %v1190, %v1206
      %v1227 = vmul.f32 %v1191, %v1206
      %v1228 = vmul.f32 %v1192, %v1206
      %v1229 = vmul.f32 %v1193, %v1206
      %v1230 = vmul.f32 %v1194, %v1206
      %v1231 = vmul.f32 %v1195, %v1206
      %v1232 = vmul.f32 %v1196, %v1206
      %v1233 = vmul.f32 %v1197, %v1206
      %v1234 = vmul.f32 %v1198, %v1206
      %v1235 = vmul.f32 %v1199, %v1206
      %v1236 = vmul.f32 %v1200, %v1206
      %v1237 = vmul.f32 %v1201, %v1206
      %v1238 = vmul.f32 %v1202, %v1206
      %v1239 = vadd.f32 %v1138, %v1207
      %v1240 = vadd.f32 %v1139, %v1208
      %v1241 = vadd.f32 %v1140, %v1209
      %v1242 = vadd.f32 %v1141, %v1210
      %v1243 = vadd.f32 %v1142, %v1211
      %v1244 = vadd.f32 %v1143, %v1212
      %v1245 = vadd.f32 %v1144, %v1213
      %v1246 = vadd.f32 %v1145, %v1214
      %v1247 = vadd.f32 %v1146, %v1215
      %v1248 = vadd.f32 %v1147, %v1216
      %v1249 = vadd.f32 %v1148, %v1217
      %v1250 = vadd.f32 %v1149, %v1218
      %v1251 = vadd.f32 %v1150, %v1219
      %v1252 = vadd.f32 %v1151, %v1220
      %v1253 = vadd.f32 %v1152, %v1221
      %v1254 = vadd.f32 %v1153, %v1222
      %v1255 = vadd.f32 %v1154, %v1223
      %v1256 = vadd.f32 %v1155, %v1224
      %v1257 = vadd.f32 %v1156, %v1225
      %v1258 = vadd.f32 %v1157, %v1226
      %v1259 = vadd.f32 %v1158, %v1227
      %v1260 = vadd.f32 %v1159, %v1228
      %v1261 = vadd.f32 %v1160, %v1229
      %v1262 = vadd.f32 %v1161, %v1230
      %v1263 = vadd.f32 %v1162, %v1231
      %v1264 = vadd.f32 %v1163, %v1232
      %v1265 = vadd.f32 %v1164, %v1233
      %v1266 = vadd.f32 %v1165, %v1234
      %v1267 = vadd.f32 %v1166, %v1235
      %v1268 = vadd.f32 %v1167, %v1236
      %v1269 = vadd.f32 %v1168, %v1237
      %v1270 = vadd.f32 %v1169, %v1238
      %1271 = vst.msk [vmem:[%s232] sm:$0xff] %vm233, %v1239
      %1272 = vst.msk [vmem:[%s232 + $0x8] sm:$0xff] %vm233, %v1240
      %1273 = vst.msk [vmem:[%s232 + $0x10] sm:$0xff] %vm233, %v1241
      %1274 = vst.msk [vmem:[%s232 + $0x18] sm:$0xff] %vm233, %v1242
      %1275 = vst.msk [vmem:[%s232 + $0x20] sm:$0xff] %vm233, %v1243
      %1276 = vst.msk [vmem:[%s232 + $0x28] sm:$0xff] %vm233, %v1244
      %1277 = vst.msk [vmem:[%s232 + $0x30] sm:$0xff] %vm233, %v1245
      %1278 = vst.msk [vmem:[%s232 + $0x38] sm:$0xff] %vm233, %v1246
      %1279 = vst.msk [vmem:[%s232 + $0x40] sm:$0xff] %vm233, %v1247
      %1280 = vst.msk [vmem:[%s232 + $0x48] sm:$0xff] %vm233, %v1248
      %1281 = vst.msk [vmem:[%s232 + $0x50] sm:$0xff] %vm233, %v1249
      %1282 = vst.msk [vmem:[%s232 + $0x58] sm:$0xff] %vm233, %v1250
      %1283 = vst.msk [vmem:[%s232 + $0x60] sm:$0xff] %vm233, %v1251
      %1284 = vst.msk [vmem:[%s232 + $0x68] sm:$0xff] %vm233, %v1252
      %1285 = vst.msk [vmem:[%s232 + $0x70] sm:$0xff] %vm233, %v1253
      %1286 = vst.msk [vmem:[%s232 + $0x78] sm:$0xff] %vm233, %v1254
      %1287 = vst.msk [vmem:[%s232 + $0x80] sm:$0xff] %vm233, %v1255
      %1288 = vst.msk [vmem:[%s232 + $0x88] sm:$0xff] %vm233, %v1256
      %1289 = vst.msk [vmem:[%s232 + $0x90] sm:$0xff] %vm233, %v1257
      %1290 = vst.msk [vmem:[%s232 + $0x98] sm:$0xff] %vm233, %v1258
      %1291 = vst.msk [vmem:[%s232 + $0xa0] sm:$0xff] %vm233, %v1259
      %1292 = vst.msk [vmem:[%s232 + $0xa8] sm:$0xff] %vm233, %v1260
      %1293 = vst.msk [vmem:[%s232 + $0xb0] sm:$0xff] %vm233, %v1261
      %1294 = vst.msk [vmem:[%s232 + $0xb8] sm:$0xff] %vm233, %v1262
      %1295 = vst.msk [vmem:[%s232 + $0xc0] sm:$0xff] %vm233, %v1263
      %1296 = vst.msk [vmem:[%s232 + $0xc8] sm:$0xff] %vm233, %v1264
      %1297 = vst.msk [vmem:[%s232 + $0xd0] sm:$0xff] %vm233, %v1265
      %1298 = vst.msk [vmem:[%s232 + $0xd8] sm:$0xff] %vm233, %v1266
      %1299 = vst.msk [vmem:[%s232 + $0xe0] sm:$0xff] %vm233, %v1267
      %1300 = vst.msk [vmem:[%s232 + $0xe8] sm:$0xff] %vm233, %v1268
      %1301 = vst.msk [vmem:[%s232 + $0xf0] sm:$0xff] %vm233, %v1269
      %1302 = vst.msk [vmem:[%s232 + $0xf8] sm:$0xff] %vm233, %v1270
      %p1303 = scmp.lt.s32.totalorder %s18, 1
      %s1304 = scalar_select %p1303, %s18, 1
      %p1305 = scmp.lt.s32.totalorder %s19, 0
      %s1306 = scalar_select %p1305, %s19, 0
      %s1307 = smul.addr %s1304, 32
      %s1308 = sadd.s32 %s1306, %s1307
      %s1309 = smul.addr %s1308, 8
      %s1310 = scalar_lea.vmem %s3, %s1309
      // Predicated region
      $region33: #{tpu_custom_call.1} parent=31 // pred_check
        %p1311 = pneg %p126
      $region34: #{tpu_custom_call.1} parent=31 // pred_check_branch
        %1313 = sbr.rel (%p1311) target = $region36
      $region35: #{tpu_custom_call.1} parent=31 // pred_region
        _
      $region36: #{tpu_custom_call.1} parent=31 // pred_fallthru
        _
    $region32: #{tpu_custom_call.1} parent=5 // pred_fallthru
      _
    %p1314 = scmp.le.s32.totalorder 2, %s9
    // Predicated region
    $region37: #{tpu_custom_call.1} parent=5 // pred_check
      %p1315 = pneg %p1314
    $region38: #{tpu_custom_call.1} parent=5 // pred_check_branch
      %1317 = sbr.rel (%p1315) target = $region40
    $region39: #{tpu_custom_call.1} parent=5 // pred_region
      %s1318 = ssub.s32 %s9, 2
      // Predicated region
      $region41: #{tpu_custom_call.1} parent=39 // pred_check
        %p1319 = pneg %p132
      $region42: #{tpu_custom_call.1} parent=39 // pred_check_branch
        %1321 = sbr.rel (%p1319) target = $region44
      $region43: #{tpu_custom_call.1} parent=39 // pred_region
        %p1322 = scmp.lt.s32.totalorder %s20, 1
        %s1323 = scalar_select %p1322, %s20, 1
        %p1324 = scmp.lt.s32.totalorder %s21, 0
        %s1325 = scalar_select %p1324, %s21, 0
        %s1326 = smul.addr %s1323, 32
        %s1327 = sadd.s32 %s1325, %s1326
        %s1328 = smul.addr %s1327, 8
        %s1329 = scalar_lea.vmem %s3, %s1328
      $region44: #{tpu_custom_call.1} parent=39 // pred_fallthru
        _
    $region40: #{tpu_custom_call.1} parent=5 // pred_fallthru
      _
  $region6: #{tpu_custom_call.1} parent=0 // loop_footer
    %s13 = sadd.s32 1, %s9
  $region7: #{tpu_custom_call.1} parent=0 // loop_footer_branch
    %8 = sbr.rel target = $region3
  $region8: #{tpu_custom_call.1} parent=0 // loop_exit
    _

</llo_original>
